<compile_context>
chip_gen: v7x
topology: tpu7x:2x2x1
jax: 0.10.0
libtpu: 0.0.40
codegen_flags: <defaults>
</compile_context>

<pallas_src>
import math

import jax
import jax.numpy as jnp
from jax.experimental import pallas as pl
from jax.experimental.pallas import tpu as pltpu


def _round_up(x: int, m: int) -> int:
    return (x + m - 1) // m * m


def _min_sublane(dtype) -> int:
    # minimum second-minor tile: 8 for 4-byte, 16 for 2-byte, 32 for 1-byte dtypes
    return max(8, 32 // jnp.dtype(dtype).itemsize)


def _vmem_capacity_bytes() -> int:
    try:
        cap = int(pltpu.get_tpu_info().vmem_capacity_bytes)
        if cap > 0:
            return cap
    except Exception:
        pass
    return 64 * 1024 * 1024  # v7x per-core floor; safe on every generation


def _choose_tile(rows: int, desired: int, align: int) -> int:
    """Pick a folded-row tile: align, respect `desired`, prefer >=2 (even) grid steps."""
    desired = max(align, min(_round_up(desired, align), _round_up(rows, align)))
    steps = -(-rows // desired)
    if steps == 1 and rows >= 2 * align:
        steps = 2                       # keep both v7x TensorCores busy
    elif steps > 1 and steps % 2 == 1:
        steps += 1                      # prefer an even grid for megacore balance
    return max(align, _round_up(-(-rows // steps), align))


def make_ffn_kernel(num_hidden_blocks: int):
    """Pallas kernel body: Linear -> (Linear+ReLU)*N -> Linear, all in VMEM."""

    def kernel(x_ref, *refs):
        o_ref = refs[-1]
        p = refs[:-1]      # [W_in, b_in, (W_h, b_h)*, W_out, b_out]

        # regulate_input: plain Linear, no activation. x cast in VMEM (under DMA).
        w0 = p[0][...]
        h = jnp.dot(x_ref[...].astype(w0.dtype), w0,
                    preferred_element_type=jnp.float32) + p[1][...]

        # hidden_layers: (Linear + ReLU) blocks. Accumulate + bias + ReLU in f32
        # (v5e-friendly); activation carried at matmul width (bf16 by default)
        # between layers to halve live intermediate VMEM.
        idx = 2
        for _ in range(num_hidden_blocks):
            w = p[idx][...]
            h = jnp.dot(h.astype(w.dtype), w,
                        preferred_element_type=jnp.float32) + p[idx + 1][...]
            h = jnp.maximum(h, 0.0).astype(w.dtype)
            idx += 2

        # regulate_output: plain Linear, no activation.
        w = p[idx][...]
        y = jnp.dot(h.astype(w.dtype), w,
                    preferred_element_type=jnp.float32) + p[idx + 1][...]
        o_ref[...] = y.astype(o_ref.dtype)

    return kernel


def ts_feedforward(x, params, horizon: int, *,
                   block_batch: int = 32768,
                   compute_dtype=jnp.bfloat16,
                   out_dtype=None,
                   fold_lanes: bool = True,
                   max_folded_weight_bytes=None,
                   single_buffer_weights: bool = True,
                   vmem_budget_fraction: float = 0.6):
    """params is a flat list [W_in, b_in, (W_h, b_h)*, W_out, b_out];
    weights are (in_features, out_features), biases are (1, out_features).

    compute_dtype: dtype of the MXU operands (weights are cast wrapper-side,
      x / activations are cast in-kernel); accumulation is always f32.
    out_dtype: output dtype (default: x.dtype, i.e. f32 PyTorch parity).
    """
    batch, history = x.shape
    num_hidden_blocks = (len(params) - 4) // 2
    compute_dtype = jnp.dtype(compute_dtype)
    out_dtype = jnp.dtype(out_dtype) if out_dtype is not None else jnp.dtype(x.dtype)

    ws = list(params[0::2])
    bs = list(params[1::2])
    widths = [int(history)] + [int(w.shape[1]) for w in ws]
    assert widths[-1] == horizon

    vmem_cap = _vmem_capacity_bytes()
    if max_folded_weight_bytes is None:
        max_folded_weight_bytes = vmem_cap // 8   # generation-aware cap

    # ---- lane-folding factor: make every layer width a multiple of 128 ----
    fold = 1
    if fold_lanes:
        f = 1
        for w_ in widths:
            f = math.lcm(f, 128 // math.gcd(128, w_))
        bd_bytes = sum(int(w.shape[0]) * int(w.shape[1]) for w in ws) \
            * f * f * compute_dtype.itemsize
        if f > 1 and bd_bytes <= max_folded_weight_bytes:
            fold = f
    # NOTE: fold == 1 fallback is numerically fine but leaves narrow-lane
    # (history/horizon-wide) loads and masked partial stores -> slower.

    if fold > 1:
        # Block-diagonal expansion: kron(I_fold, W) keeps the math bit-identical
        # (extra products are exact zeros).
        eye = jnp.eye(fold, dtype=ws[0].dtype)
        ws = [jnp.kron(eye, w) for w in ws]
        bs = [jnp.tile(b, (1, fold)) for b in bs]

    # Weights cast wrapper-side (tiny, one-off); biases stay f32; x is NOT
    # pre-cast here -- the kernel casts it in VMEM (saves an HBM pass).
    ws = [w.astype(compute_dtype) for w in ws]
    bs = [b.astype(jnp.float32) for b in bs]

    in_cols = fold * history
    out_cols = fold * horizon
    align = max(_min_sublane(x.dtype), _min_sublane(out_dtype))

    # ---- pad only to the fold/sublane alignment, never to the batch tile ----
    batch_p = _round_up(batch, fold * align)
    if batch_p != batch:
        x = jnp.pad(x, ((0, batch_p - batch), (0, 0)))
    rows_p = batch_p // fold
    if fold > 1:
        x = x.reshape(rows_p, in_cols)          # row-major fold into lanes (no copy)

    # ---- tile sizing: generation-aware VMEM budget, then grid balance ----
    w_buffers = 1 if single_buffer_weights else 2
    weight_bytes_1x = (sum(int(w.size) for w in ws) * compute_dtype.itemsize +
                       sum(int(b.size) for b in bs) * 4)
    per_row_bytes = (2 * in_cols * jnp.dtype(x.dtype).itemsize      # x, double-buffered
                     + 2 * out_cols * out_dtype.itemsize            # y, double-buffered
                     + max(widths) * fold * (2 * 4 + compute_dtype.itemsize))  # live acts
    budget = int(vmem_cap * vmem_budget_fraction)
    tbf_vmem_max = max(align,
                       (budget - weight_bytes_1x * w_buffers) // per_row_bytes
                       // align * align)
    desired_tbf = max(align, block_batch // fold)
    tbf = _choose_tile(rows_p, min(desired_tbf, tbf_vmem_max), align)
    grid = (pl.cdiv(rows_p, tbf),)

    # vmem limit covers the worst case (double-buffered weights) plus slack
    vmem_limit = int(min(vmem_cap * 0.9,
                         max(weight_bytes_1x * 2 + tbf * per_row_bytes + (4 << 20),
                             32 << 20)))

    flat_params = [t for pair in zip(ws, bs) for t in pair]
    kernel = make_ffn_kernel(num_hidden_blocks)

    def _call(single_buffer: bool):
        x_spec = pl.BlockSpec((tbf, in_cols), lambda i: (i, 0))
        if single_buffer:
            # constant index_map => single buffer is enough; saves weight VMEM
            param_specs = [pl.BlockSpec(p.shape, lambda i: (0, 0),
                                        pipeline_mode=pl.Buffered(1))
                           for p in flat_params]
        else:
            param_specs = [pl.BlockSpec(p.shape, lambda i: (0, 0))
                           for p in flat_params]
        out_spec = pl.BlockSpec((tbf, out_cols), lambda i: (i, 0))
        return pl.pallas_call(
            kernel,
            out_shape=jax.ShapeDtypeStruct((rows_p, out_cols), out_dtype),
            grid=grid,
            in_specs=[x_spec] + param_specs,
            out_specs=out_spec,
            compiler_params=pltpu.CompilerParams(
                dimension_semantics=("parallel",),   # megacore batch sharding
                vmem_limit_bytes=vmem_limit,
            ),
        )(x, *flat_params)

    try:
        out = _call(single_buffer_weights)
    except Exception:
        if not single_buffer_weights:
            raise
        out = _call(False)   # fallback: default double-buffered parameter blocks

    if fold > 1:
        out = out.reshape(batch_p, horizon)
    return out[:batch]


def init_linear(key, fan_in: int, fan_out: int, dtype=jnp.float32):
    """torch.nn.Linear-style init; W stored as (in, out), bias as (1, out)."""
    kw, kb = jax.random.split(key)
    bound = 1.0 / math.sqrt(fan_in)
    w = jax.random.uniform(kw, (fan_in, fan_out), dtype, -bound, bound)
    b = jax.random.uniform(kb, (1, fan_out), dtype, -bound, bound)
    return w, b


def init_ts_feedforward_params(key, history_length: int, horizon: int,
                               hidden_widths, dtype=jnp.float32):
    dims = [history_length] + list(hidden_widths) + [horizon]
    params = []
    for d_in, d_out in zip(dims[:-1], dims[1:]):
        key, sub = jax.random.split(key)
        w, b = init_linear(sub, d_in, d_out, dtype)
        params += [w, b]
    return params


def ts_feedforward_ref(x, params):
    """Pure-JAX reference (unfolded, full-precision matmuls)."""
    hp = jax.lax.Precision.HIGHEST
    num_hidden_blocks = (len(params) - 4) // 2
    h = jnp.dot(x, params[0], precision=hp) + params[1]
    idx = 2
    for _ in range(num_hidden_blocks):
        h = jnp.maximum(jnp.dot(h, params[idx], precision=hp) + params[idx + 1], 0.0)
        idx += 2
    return jnp.dot(h, params[idx], precision=hp) + params[idx + 1]


if __name__ == "__main__":
    history_length = 16
    horizon = 8
    hidden_widths = [32, 32]      # TSFFNParams(hidden_widths=[32, 32])

    key = jax.random.PRNGKey(0)
    k_x, k_p, k_xl = jax.random.split(key, 3)
    params = init_ts_feedforward_params(k_p, history_length, horizon, hidden_widths)

    # ---- small, module-consistent shapes (single grid step) ----
    batch = 4
    x = jax.random.normal(k_x, (batch, history_length), dtype=jnp.float32)
    ref = ts_feedforward_ref(x, params)

    # exact f32 MXU operands (block-diagonal fold is bit-identical math)
    out_f32 = jax.block_until_ready(
        ts_feedforward(x, params, horizon, compute_dtype=jnp.float32))
    assert out_f32.shape == (batch, horizon)
    assert out_f32.dtype == x.dtype
    assert jnp.allclose(out_f32, ref, atol=1e-2, rtol=1e-2)

    # default path: bf16 MXU operands, f32 accumulation, f32 output
    out_bf16 = jax.block_until_ready(ts_feedforward(x, params, horizon))
    assert out_bf16.shape == (batch, horizon)
    assert out_bf16.dtype == x.dtype
    assert jnp.allclose(out_bf16, ref, atol=1e-1, rtol=1e-1)

    # ---- larger batch: multi-step grid, megacore split, ragged last block ----
    batch_l = 3200
    x_l = jax.random.normal(k_xl, (batch_l, history_length), dtype=jnp.float32)
    ref_l = ts_feedforward_ref(x_l, params)

    out_l = jax.block_until_ready(ts_feedforward(x_l, params, horizon))
    assert out_l.shape == (batch_l, horizon)
    assert jnp.allclose(out_l, ref_l, atol=1e-1, rtol=1e-1)

    out_l32 = jax.block_until_ready(
        ts_feedforward(x_l, params, horizon,
                       compute_dtype=jnp.float32, block_batch=512))
    assert jnp.allclose(out_l32, ref_l, atol=1e-2, rtol=1e-2)

    print("KERNEL_OK")
</pallas_src>

<mosaic_0001>
module attributes {stable_mosaic.version = 11 : i64} {
  func.func @kernel(%arg0: i32, %arg1: memref<8x256xf32, #tpu.memory_space<vmem>>, %arg2: memref<256x512xf32, #tpu.memory_space<vmem>>, %arg3: memref<1x512xf32, #tpu.memory_space<vmem>>, %arg4: memref<512x512xf32, #tpu.memory_space<vmem>>, %arg5: memref<1x512xf32, #tpu.memory_space<vmem>>, %arg6: memref<512x128xf32, #tpu.memory_space<vmem>>, %arg7: memref<1x128xf32, #tpu.memory_space<vmem>>, %arg8: memref<8x128xf32, #tpu.memory_space<vmem>>) attributes {dimension_semantics = [#tpu.dimension_semantics<parallel>], iteration_bounds = array<i64: 1>, scalar_prefetch = 0 : i64, scratch_operands = 0 : i64, tpu.core_type = #tpu.core_type<tc>, window_params = [{transform_indices = @transform_0, window_bounds = array<i64: 8, 256>}, {pipeline_mode = #tpu.pipeline_mode<synchronous>, transform_indices = @transform_1, window_bounds = array<i64: 256, 512>}, {pipeline_mode = #tpu.pipeline_mode<synchronous>, transform_indices = @transform_2, window_bounds = array<i64: 1, 512>}, {pipeline_mode = #tpu.pipeline_mode<synchronous>, transform_indices = @transform_3, window_bounds = array<i64: 512, 512>}, {pipeline_mode = #tpu.pipeline_mode<synchronous>, transform_indices = @transform_4, window_bounds = array<i64: 1, 512>}, {pipeline_mode = #tpu.pipeline_mode<synchronous>, transform_indices = @transform_5, window_bounds = array<i64: 512, 128>}, {pipeline_mode = #tpu.pipeline_mode<synchronous>, transform_indices = @transform_6, window_bounds = array<i64: 1, 128>}, {transform_indices = @transform_7, window_bounds = array<i64: 8, 128>}]} {
    %c0 = arith.constant 0 : index
    %c0_0 = arith.constant 0 : index
    %0 = vector.load %arg2[%c0, %c0_0] : memref<256x512xf32, #tpu.memory_space<vmem>>, vector<256x512xf32>
    %c0_1 = arith.constant 0 : index
    %c0_2 = arith.constant 0 : index
    %1 = vector.load %arg1[%c0_1, %c0_2] : memref<8x256xf32, #tpu.memory_space<vmem>>, vector<8x256xf32>
    %cst = arith.constant dense<0.000000e+00> : vector<8x512xf32>
    %2 = tpu.matmul %1, %0, %cst {dimension_numbers = #tpu.dot_dimension_numbers<[1], [0], [0], [1], [0, 0, 1, 1], [], []>} : vector<8x256xf32>, vector<256x512xf32>, vector<8x512xf32> -> vector<8x512xf32>
    %c0_3 = arith.constant 0 : index
    %c0_4 = arith.constant 0 : index
    %3 = vector.load %arg3[%c0_3, %c0_4] : memref<1x512xf32, #tpu.memory_space<vmem>>, vector<1x512xf32>
    %4 = vector.broadcast %3 : vector<1x512xf32> to vector<8x512xf32>
    %5 = arith.addf %2, %4 : vector<8x512xf32>
    %c0_5 = arith.constant 0 : index
    %c0_6 = arith.constant 0 : index
    %6 = vector.load %arg4[%c0_5, %c0_6] : memref<512x512xf32, #tpu.memory_space<vmem>>, vector<512x512xf32>
    %cst_7 = arith.constant dense<0.000000e+00> : vector<8x512xf32>
    %7 = tpu.matmul %5, %6, %cst_7 {dimension_numbers = #tpu.dot_dimension_numbers<[1], [0], [0], [1], [0, 0, 1, 1], [], []>} : vector<8x512xf32>, vector<512x512xf32>, vector<8x512xf32> -> vector<8x512xf32>
    %c0_8 = arith.constant 0 : index
    %c0_9 = arith.constant 0 : index
    %8 = vector.load %arg5[%c0_8, %c0_9] : memref<1x512xf32, #tpu.memory_space<vmem>>, vector<1x512xf32>
    %9 = vector.broadcast %8 : vector<1x512xf32> to vector<8x512xf32>
    %10 = arith.addf %7, %9 : vector<8x512xf32>
    %cst_10 = arith.constant 0.000000e+00 : f32
    %11 = vector.broadcast %cst_10 : f32 to vector<8x512xf32>
    %12 = arith.maximumf %10, %11 : vector<8x512xf32>
    %c0_11 = arith.constant 0 : index
    %c0_12 = arith.constant 0 : index
    %13 = vector.load %arg6[%c0_11, %c0_12] : memref<512x128xf32, #tpu.memory_space<vmem>>, vector<512x128xf32>
    %cst_13 = arith.constant dense<0.000000e+00> : vector<8x128xf32>
    %14 = tpu.matmul %12, %13, %cst_13 {dimension_numbers = #tpu.dot_dimension_numbers<[1], [0], [0], [1], [0, 0, 1, 1], [], []>} : vector<8x512xf32>, vector<512x128xf32>, vector<8x128xf32> -> vector<8x128xf32>
    %c0_14 = arith.constant 0 : index
    %c0_15 = arith.constant 0 : index
    %15 = vector.load %arg7[%c0_14, %c0_15] : memref<1x128xf32, #tpu.memory_space<vmem>>, vector<1x128xf32>
    %16 = vector.broadcast %15 : vector<1x128xf32> to vector<8x128xf32>
    %17 = arith.addf %14, %16 : vector<8x128xf32>
    %c0_16 = arith.constant 0 : index
    %c0_17 = arith.constant 0 : index
    %18 = vector.load %arg8[%c0_16, %c0_17] : memref<8x128xf32, #tpu.memory_space<vmem>>, vector<8x128xf32>
    tpu.vector_store %arg8[%c0_16, %c0_17], %17 {strides = array<i32>} : memref<8x128xf32, #tpu.memory_space<vmem>>, vector<8x128xf32>,
    return
  }
  func.func @transform_0(%arg0: i32) -> (i32, i32) {
    %c0_i32 = arith.constant 0 : i32
    %c0_i32_0 = arith.constant 0 : i32
    return %arg0, %c0_i32 : i32, i32
  }
  func.func @transform_1(%arg0: i32) -> (i32, i32) {
    %c0_i32 = arith.constant 0 : i32
    %c0_i32_0 = arith.constant 0 : i32
    %c0_i32_1 = arith.constant 0 : i32
    return %c0_i32, %c0_i32_0 : i32, i32
  }
  func.func @transform_2(%arg0: i32) -> (i32, i32) {
    %c0_i32 = arith.constant 0 : i32
    %c0_i32_0 = arith.constant 0 : i32
    %c0_i32_1 = arith.constant 0 : i32
    return %c0_i32, %c0_i32_0 : i32, i32
  }
  func.func @transform_3(%arg0: i32) -> (i32, i32) {
    %c0_i32 = arith.constant 0 : i32
    %c0_i32_0 = arith.constant 0 : i32
    %c0_i32_1 = arith.constant 0 : i32
    return %c0_i32, %c0_i32_0 : i32, i32
  }
  func.func @transform_4(%arg0: i32) -> (i32, i32) {
    %c0_i32 = arith.constant 0 : i32
    %c0_i32_0 = arith.constant 0 : i32
    %c0_i32_1 = arith.constant 0 : i32
    return %c0_i32, %c0_i32_0 : i32, i32
  }
  func.func @transform_5(%arg0: i32) -> (i32, i32) {
    %c0_i32 = arith.constant 0 : i32
    %c0_i32_0 = arith.constant 0 : i32
    %c0_i32_1 = arith.constant 0 : i32
    return %c0_i32, %c0_i32_0 : i32, i32
  }
  func.func @transform_6(%arg0: i32) -> (i32, i32) {
    %c0_i32 = arith.constant 0 : i32
    %c0_i32_0 = arith.constant 0 : i32
    %c0_i32_1 = arith.constant 0 : i32
    return %c0_i32, %c0_i32_0 : i32, i32
  }
  func.func @transform_7(%arg0: i32) -> (i32, i32) {
    %c0_i32 = arith.constant 0 : i32
    %c0_i32_0 = arith.constant 0 : i32
    return %arg0, %c0_i32 : i32, i32
  }
}

module attributes {stable_mosaic.version = 11 : i64} {
  func.func @kernel(%arg0: i32, %arg1: memref<8x256xf32, #tpu.memory_space<vmem>>, %arg2: memref<256x512xf32, #tpu.memory_space<vmem>>, %arg3: memref<1x512xf32, #tpu.memory_space<vmem>>, %arg4: memref<512x512xf32, #tpu.memory_space<vmem>>, %arg5: memref<1x512xf32, #tpu.memory_space<vmem>>, %arg6: memref<512x128xf32, #tpu.memory_space<vmem>>, %arg7: memref<1x128xf32, #tpu.memory_space<vmem>>, %arg8: memref<8x128xf32, #tpu.memory_space<vmem>>) attributes {dimension_semantics = [#tpu.dimension_semantics<parallel>], iteration_bounds = array<i64: 1>, scalar_prefetch = 0 : i64, scratch_operands = 0 : i64, tpu.core_type = #tpu.core_type<tc>, window_params = [{transform_indices = @transform_0, window_bounds = array<i64: 8, 256>}, {pipeline_mode = #tpu.pipeline_mode<synchronous>, transform_indices = @transform_1, window_bounds = array<i64: 256, 512>}, {pipeline_mode = #tpu.pipeline_mode<synchronous>, transform_indices = @transform_2, window_bounds = array<i64: 1, 512>}, {pipeline_mode = #tpu.pipeline_mode<synchronous>, transform_indices = @transform_3, window_bounds = array<i64: 512, 512>}, {pipeline_mode = #tpu.pipeline_mode<synchronous>, transform_indices = @transform_4, window_bounds = array<i64: 1, 512>}, {pipeline_mode = #tpu.pipeline_mode<synchronous>, transform_indices = @transform_5, window_bounds = array<i64: 512, 128>}, {pipeline_mode = #tpu.pipeline_mode<synchronous>, transform_indices = @transform_6, window_bounds = array<i64: 1, 128>}, {transform_indices = @transform_7, window_bounds = array<i64: 8, 128>}]} {
    %c0 = arith.constant 0 : index
    %c0_0 = arith.constant 0 : index
    %0 = vector.load %arg2[%c0, %c0_0] : memref<256x512xf32, #tpu.memory_space<vmem>>, vector<256x512xf32>
    %c0_1 = arith.constant 0 : index
    %c0_2 = arith.constant 0 : index
    %1 = vector.load %arg1[%c0_1, %c0_2] : memref<8x256xf32, #tpu.memory_space<vmem>>, vector<8x256xf32>
    %cst = arith.constant dense<0.000000e+00> : vector<8x512xf32>
    %2 = tpu.matmul %1, %0, %cst {dimension_numbers = #tpu.dot_dimension_numbers<[1], [0], [0], [1], [0, 0, 1, 1], [], []>} : vector<8x256xf32>, vector<256x512xf32>, vector<8x512xf32> -> vector<8x512xf32>
    %c0_3 = arith.constant 0 : index
    %c0_4 = arith.constant 0 : index
    %3 = vector.load %arg3[%c0_3, %c0_4] : memref<1x512xf32, #tpu.memory_space<vmem>>, vector<1x512xf32>
    %4 = vector.broadcast %3 : vector<1x512xf32> to vector<8x512xf32>
    %5 = arith.addf %2, %4 : vector<8x512xf32>
    %c0_5 = arith.constant 0 : index
    %c0_6 = arith.constant 0 : index
    %6 = vector.load %arg4[%c0_5, %c0_6] : memref<512x512xf32, #tpu.memory_space<vmem>>, vector<512x512xf32>
    %cst_7 = arith.constant dense<0.000000e+00> : vector<8x512xf32>
    %7 = tpu.matmul %5, %6, %cst_7 {dimension_numbers = #tpu.dot_dimension_numbers<[1], [0], [0], [1], [0, 0, 1, 1], [], []>} : vector<8x512xf32>, vector<512x512xf32>, vector<8x512xf32> -> vector<8x512xf32>
    %c0_8 = arith.constant 0 : index
    %c0_9 = arith.constant 0 : index
    %8 = vector.load %arg5[%c0_8, %c0_9] : memref<1x512xf32, #tpu.memory_space<vmem>>, vector<1x512xf32>
    %9 = vector.broadcast %8 : vector<1x512xf32> to vector<8x512xf32>
    %10 = arith.addf %7, %9 : vector<8x512xf32>
    %cst_10 = arith.constant 0.000000e+00 : f32
    %11 = vector.broadcast %cst_10 : f32 to vector<8x512xf32>
    %12 = arith.maximumf %10, %11 : vector<8x512xf32>
    %c0_11 = arith.constant 0 : index
    %c0_12 = arith.constant 0 : index
    %13 = vector.load %arg6[%c0_11, %c0_12] : memref<512x128xf32, #tpu.memory_space<vmem>>, vector<512x128xf32>
    %cst_13 = arith.constant dense<0.000000e+00> : vector<8x128xf32>
    %14 = tpu.matmul %12, %13, %cst_13 {dimension_numbers = #tpu.dot_dimension_numbers<[1], [0], [0], [1], [0, 0, 1, 1], [], []>} : vector<8x512xf32>, vector<512x128xf32>, vector<8x128xf32> -> vector<8x128xf32>
    %c0_14 = arith.constant 0 : index
    %c0_15 = arith.constant 0 : index
    %15 = vector.load %arg7[%c0_14, %c0_15] : memref<1x128xf32, #tpu.memory_space<vmem>>, vector<1x128xf32>
    %16 = vector.broadcast %15 : vector<1x128xf32> to vector<8x128xf32>
    %17 = arith.addf %14, %16 : vector<8x128xf32>
    %c0_16 = arith.constant 0 : index
    %c0_17 = arith.constant 0 : index
    %18 = vector.load %arg8[%c0_16, %c0_17] : memref<8x128xf32, #tpu.memory_space<vmem>>, vector<8x128xf32>
    tpu.vector_store %arg8[%c0_16, %c0_17], %17 {strides = array<i32>} : memref<8x128xf32, #tpu.memory_space<vmem>>, vector<8x128xf32>,
    return
  }
  func.func @transform_0(%arg0: i32) -> (i32, i32) {
    %c0_i32 = arith.constant 0 : i32
    %c0_i32_0 = arith.constant 0 : i32
    return %arg0, %c0_i32 : i32, i32
  }
  func.func @transform_1(%arg0: i32) -> (i32, i32) {
    %c0_i32 = arith.constant 0 : i32
    %c0_i32_0 = arith.constant 0 : i32
    %c0_i32_1 = arith.constant 0 : i32
    return %c0_i32, %c0_i32_0 : i32, i32
  }
  func.func @transform_2(%arg0: i32) -> (i32, i32) {
    %c0_i32 = arith.constant 0 : i32
    %c0_i32_0 = arith.constant 0 : i32
    %c0_i32_1 = arith.constant 0 : i32
    return %c0_i32, %c0_i32_0 : i32, i32
  }
  func.func @transform_3(%arg0: i32) -> (i32, i32) {
    %c0_i32 = arith.constant 0 : i32
    %c0_i32_0 = arith.constant 0 : i32
    %c0_i32_1 = arith.constant 0 : i32
    return %c0_i32, %c0_i32_0 : i32, i32
  }
  func.func @transform_4(%arg0: i32) -> (i32, i32) {
    %c0_i32 = arith.constant 0 : i32
    %c0_i32_0 = arith.constant 0 : i32
    %c0_i32_1 = arith.constant 0 : i32
    return %c0_i32, %c0_i32_0 : i32, i32
  }
  func.func @transform_5(%arg0: i32) -> (i32, i32) {
    %c0_i32 = arith.constant 0 : i32
    %c0_i32_0 = arith.constant 0 : i32
    %c0_i32_1 = arith.constant 0 : i32
    return %c0_i32, %c0_i32_0 : i32, i32
  }
  func.func @transform_6(%arg0: i32) -> (i32, i32) {
    %c0_i32 = arith.constant 0 : i32
    %c0_i32_0 = arith.constant 0 : i32
    %c0_i32_1 = arith.constant 0 : i32
    return %c0_i32, %c0_i32_0 : i32, i32
  }
  func.func @transform_7(%arg0: i32) -> (i32, i32) {
    %c0_i32 = arith.constant 0 : i32
    %c0_i32_0 = arith.constant 0 : i32
    return %arg0, %c0_i32 : i32, i32
  }
}

</mosaic_0001>

<llo_original>
// kernel: tpu_custom_call.1
$region0: #{tpu_custom_call.1}
  #allocation0 [shape = 'u32[]', space=smem, size = 0x4, offset = 0x4, fixed_abs, tag = 'smem constant byte address 0x4 - core index']
  #allocation1 [shape = 'u32[144,128]{1,0:T(1,128)}', space=vmem, size = 0x12000, scoped, tag = 'internal scratch']
  %s0 = inlined_call_operand.hbm [shape: f32[8,256], index: 0, kind: input, shape index: {}]
  %s1 = inlined_call_operand.hbm [shape: f32[256,512], index: 1, kind: input, shape index: {}]
  %s2 = inlined_call_operand.vmem [shape: f32[1,512], index: 2, kind: input, shape index: {}]
  %s3 = inlined_call_operand.hbm [shape: f32[512,512], index: 3, kind: input, shape index: {}]
  %s4 = inlined_call_operand.vmem [shape: f32[1,512], index: 4, kind: input, shape index: {}]
  %s5 = inlined_call_operand.hbm [shape: f32[512,128], index: 5, kind: input, shape index: {}]
  %s6 = inlined_call_operand.vmem [shape: f32[1,128], index: 6, kind: input, shape index: {}]
  %s7 = inlined_call_operand.hbm [shape: f32[8,128], index: 7, kind: output, shape index: {}]
  %s8 = sld [smem:[#allocation0]]
  $region54: #{tpu_custom_call.1} parent=0
    _
  %s10 = ssub.s32 1, %s8
  %s11 = scalar_select 0, %s10, %s8
  $region1: #{tpu_custom_call.1} parent=0
    #allocation2 [shape = 'u8[8192]{0}', space=vmem, size = 0x2000, scoped, tag = 'input window, operand 0, single buffered']
    #allocation3 [shape = 's32[1]{0}', space=sflag, size = 0x4, scoped, tag = 'scoped memory for tpu_custom_call.1']
    #allocation4 [shape = 's32[1]{0}', space=sflag, size = 0x4, scoped, tag = 'scoped memory for tpu_custom_call.1']
    #allocation5 [shape = 'u8[524288]{0}', space=vmem, size = 0x80000, scoped, tag = 'input window, operand 1, single buffered']
    #allocation6 [shape = 's32[1]{0}', space=sflag, size = 0x4, scoped, tag = 'scoped memory for tpu_custom_call.1']
    #allocation7 [shape = 'u8[1048576]{0}', space=vmem, size = 0x100000, scoped, tag = 'input window, operand 3, single buffered']
    #allocation8 [shape = 'u8[262144]{0}', space=vmem, size = 0x40000, scoped, tag = 'input window, operand 5, single buffered']
    #allocation9 [shape = 's32[1]{0}', space=sflag, size = 0x4, scoped, tag = 'scoped memory for tpu_custom_call.1']
    #allocation10 [shape = 'u8[4096]{0}', space=vmem, size = 0x1000, scoped, tag = 'output window, operand 0, single buffered']
    %12 = vsyncpa [#allocation3], 0
    %13 = vsyncpa [#allocation6], 0
    %14 = vsyncpa [#allocation9], 0
    %15 = vsyncpa [#allocation4], 0
    // Predicated region
    $region2: #{tpu_custom_call.1} parent=1 // pred_check
      _
    $region3: #{tpu_custom_call.1} parent=1 // pred_check_branch
      %17 = sbr.rel (0) target = $region5
    $region4: #{tpu_custom_call.1} parent=1 // pred_region
      %s19 = ssub.s32 256, 256
      %20 = vsyncadd [#allocation3], %s19
      %s22 = sshll.u32 [#allocation2], 4
      %s23 = int_to_ptr.vmem [resolvable:$true] %s22
      %25 = dma.hbm_to_vmem [thread:$0]  %s0, 256, %s23, [#allocation3]
    $region5: #{tpu_custom_call.1} parent=1 // pred_fallthru
      _
    // Predicated region
    $region6: #{tpu_custom_call.1} parent=1 // pred_check
      _
    $region7: #{tpu_custom_call.1} parent=1 // pred_check_branch
      %27 = sbr.rel (0) target = $region9
    $region8: #{tpu_custom_call.1} parent=1 // pred_region
      %s29 = ssub.s32 16384, 16384
      %30 = vsyncadd [#allocation6], %s29
      %s31 = sshll.u32 [#allocation5], 4
      %s32 = int_to_ptr.vmem [resolvable:$true] %s31
      %37 = dma.hbm_to_vmem [thread:$0]  %s1, 16384, %s32, [#allocation6], 512, 512, 32
    $region9: #{tpu_custom_call.1} parent=1 // pred_fallthru
      _
    // Predicated region
    $region10: #{tpu_custom_call.1} parent=1 // pred_check
      _
    $region11: #{tpu_custom_call.1} parent=1 // pred_check_branch
      %39 = sbr.rel (0) target = $region13
    $region12: #{tpu_custom_call.1} parent=1 // pred_region
      _
    $region13: #{tpu_custom_call.1} parent=1 // pred_fallthru
      _
    // Predicated region
    $region14: #{tpu_custom_call.1} parent=1 // pred_check
      _
    $region15: #{tpu_custom_call.1} parent=1 // pred_check_branch
      %41 = sbr.rel (0) target = $region17
    $region16: #{tpu_custom_call.1} parent=1 // pred_region
      %s43 = ssub.s32 32768, 32768
      %44 = vsyncadd [#allocation6], %s43
      %s45 = sshll.u32 [#allocation7], 4
      %s46 = int_to_ptr.vmem [resolvable:$true] %s45
      %51 = dma.hbm_to_vmem [thread:$0]  %s3, 32768, %s46, [#allocation6], 512, 512, 32
    $region17: #{tpu_custom_call.1} parent=1 // pred_fallthru
      _
    // Predicated region
    $region18: #{tpu_custom_call.1} parent=1 // pred_check
      _
    $region19: #{tpu_custom_call.1} parent=1 // pred_check_branch
      %53 = sbr.rel (0) target = $region21
    $region20: #{tpu_custom_call.1} parent=1 // pred_region
      _
    $region21: #{tpu_custom_call.1} parent=1 // pred_fallthru
      _
    // Predicated region
    $region22: #{tpu_custom_call.1} parent=1 // pred_check
      _
    $region23: #{tpu_custom_call.1} parent=1 // pred_check_branch
      %55 = sbr.rel (0) target = $region25
    $region24: #{tpu_custom_call.1} parent=1 // pred_region
      %s57 = ssub.s32 8192, 8192
      %58 = vsyncadd [#allocation9], %s57
      %s59 = sshll.u32 [#allocation8], 4
      %s60 = int_to_ptr.vmem [resolvable:$true] %s59
      %65 = dma.hbm_to_vmem [thread:$0]  %s5, 8192, %s60, [#allocation9], 128, 128, 8
    $region25: #{tpu_custom_call.1} parent=1 // pred_fallthru
      _
    // Predicated region
    $region26: #{tpu_custom_call.1} parent=1 // pred_check
      _
    $region27: #{tpu_custom_call.1} parent=1 // pred_check_branch
      %67 = sbr.rel (0) target = $region29
    $region28: #{tpu_custom_call.1} parent=1 // pred_region
      _
    $region29: #{tpu_custom_call.1} parent=1 // pred_fallthru
      _
    // Predicated region
    $region30: #{tpu_custom_call.1} parent=1 // pred_check
      _
    $region31: #{tpu_custom_call.1} parent=1 // pred_check_branch
      %69 = sbr.rel (0) target = $region33
    $region32: #{tpu_custom_call.1} parent=1 // pred_region
      %70 = dma.done [#allocation3], 256
    $region33: #{tpu_custom_call.1} parent=1 // pred_fallthru
      _
    // Predicated region
    $region34: #{tpu_custom_call.1} parent=1 // pred_check
      _
    $region35: #{tpu_custom_call.1} parent=1 // pred_check_branch
      %72 = sbr.rel (0) target = $region37
    $region36: #{tpu_custom_call.1} parent=1 // pred_region
      %73 = dma.done [#allocation6], 16384
    $region37: #{tpu_custom_call.1} parent=1 // pred_fallthru
      _
    // Predicated region
    $region38: #{tpu_custom_call.1} parent=1 // pred_check
      _
    $region39: #{tpu_custom_call.1} parent=1 // pred_check_branch
      %75 = sbr.rel (0) target = $region41
    $region40: #{tpu_custom_call.1} parent=1 // pred_region
      %76 = dma.done [#allocation6], 32768
    $region41: #{tpu_custom_call.1} parent=1 // pred_fallthru
      _
    // Predicated region
    $region42: #{tpu_custom_call.1} parent=1 // pred_check
      _
    $region43: #{tpu_custom_call.1} parent=1 // pred_check_branch
      %78 = sbr.rel (0) target = $region45
    $region44: #{tpu_custom_call.1} parent=1 // pred_region
      %79 = dma.done [#allocation9], 8192
    $region45: #{tpu_custom_call.1} parent=1 // pred_fallthru
      _
    %v80 = vld [vmem:[#allocation5] sm:$0xff]
    %v81 = vld [vmem:[#allocation5 + $0x8] sm:$0xff]
    %v82 = vld [vmem:[#allocation5 + $0x10] sm:$0xff]
    %v83 = vld [vmem:[#allocation5 + $0x18] sm:$0xff]
    %v84 = vld [vmem:[#allocation5 + $0x20] sm:$0xff]
    %v85 = vld [vmem:[#allocation5 + $0x28] sm:$0xff]
    %v86 = vld [vmem:[#allocation5 + $0x30] sm:$0xff]
    %v87 = vld [vmem:[#allocation5 + $0x38] sm:$0xff]
    %v88 = vld [vmem:[#allocation5 + $0x40] sm:$0xff]
    %v89 = vld [vmem:[#allocation5 + $0x48] sm:$0xff]
    %v90 = vld [vmem:[#allocation5 + $0x50] sm:$0xff]
    %v91 = vld [vmem:[#allocation5 + $0x58] sm:$0xff]
    %v92 = vld [vmem:[#allocation5 + $0x60] sm:$0xff]
    %v93 = vld [vmem:[#allocation5 + $0x68] sm:$0xff]
    %v94 = vld [vmem:[#allocation5 + $0x70] sm:$0xff]
    %v95 = vld [vmem:[#allocation5 + $0x78] sm:$0xff]
    %v96 = vld [vmem:[#allocation5 + $0x80] sm:$0xff]
    %v97 = vld [vmem:[#allocation5 + $0x88] sm:$0xff]
    %v98 = vld [vmem:[#allocation5 + $0x90] sm:$0xff]
    %v99 = vld [vmem:[#allocation5 + $0x98] sm:$0xff]
    %v100 = vld [vmem:[#allocation5 + $0xa0] sm:$0xff]
    %v101 = vld [vmem:[#allocation5 + $0xa8] sm:$0xff]
    %v102 = vld [vmem:[#allocation5 + $0xb0] sm:$0xff]
    %v103 = vld [vmem:[#allocation5 + $0xb8] sm:$0xff]
    %v104 = vld [vmem:[#allocation5 + $0xc0] sm:$0xff]
    %v105 = vld [vmem:[#allocation5 + $0xc8] sm:$0xff]
    %v106 = vld [vmem:[#allocation5 + $0xd0] sm:$0xff]
    %v107 = vld [vmem:[#allocation5 + $0xd8] sm:$0xff]
    %v108 = vld [vmem:[#allocation5 + $0xe0] sm:$0xff]
    %v109 = vld [vmem:[#allocation5 + $0xe8] sm:$0xff]
    %v110 = vld [vmem:[#allocation5 + $0xf0] sm:$0xff]
    %v111 = vld [vmem:[#allocation5 + $0xf8] sm:$0xff]
    %v112 = vld [vmem:[#allocation5 + $0x100] sm:$0xff]
    %v113 = vld [vmem:[#allocation5 + $0x108] sm:$0xff]
    %v114 = vld [vmem:[#allocation5 + $0x110] sm:$0xff]
    %v115 = vld [vmem:[#allocation5 + $0x118] sm:$0xff]
    %v116 = vld [vmem:[#allocation5 + $0x120] sm:$0xff]
    %v117 = vld [vmem:[#allocation5 + $0x128] sm:$0xff]
    %v118 = vld [vmem:[#allocation5 + $0x130] sm:$0xff]
    %v119 = vld [vmem:[#allocation5 + $0x138] sm:$0xff]
    %v120 = vld [vmem:[#allocation5 + $0x140] sm:$0xff]
    %v121 = vld [vmem:[#allocation5 + $0x148] sm:$0xff]
    %v122 = vld [vmem:[#allocation5 + $0x150] sm:$0xff]
    %v123 = vld [vmem:[#allocation5 + $0x158] sm:$0xff]
    %v124 = vld [vmem:[#allocation5 + $0x160] sm:$0xff]
    %v125 = vld [vmem:[#allocation5 + $0x168] sm:$0xff]
    %v126 = vld [vmem:[#allocation5 + $0x170] sm:$0xff]
    %v127 = vld [vmem:[#allocation5 + $0x178] sm:$0xff]
    %v128 = vld [vmem:[#allocation5 + $0x180] sm:$0xff]
    %v129 = vld [vmem:[#allocation5 + $0x188] sm:$0xff]
    %v130 = vld [vmem:[#allocation5 + $0x190] sm:$0xff]
    %v131 = vld [vmem:[#allocation5 + $0x198] sm:$0xff]
    %v132 = vld [vmem:[#allocation5 + $0x1a0] sm:$0xff]
    %v133 = vld [vmem:[#allocation5 + $0x1a8] sm:$0xff]
    %v134 = vld [vmem:[#allocation5 + $0x1b0] sm:$0xff]
    %v135 = vld [vmem:[#allocation5 + $0x1b8] sm:$0xff]
    %v136 = vld [vmem:[#allocation5 + $0x1c0] sm:$0xff]
    %v137 = vld [vmem:[#allocation5 + $0x1c8] sm:$0xff]
    %v138 = vld [vmem:[#allocation5 + $0x1d0] sm:$0xff]
    %v139 = vld [vmem:[#allocation5 + $0x1d8] sm:$0xff]
    %v140 = vld [vmem:[#allocation5 + $0x1e0] sm:$0xff]
    %v141 = vld [vmem:[#allocation5 + $0x1e8] sm:$0xff]
    %v142 = vld [vmem:[#allocation5 + $0x1f0] sm:$0xff]
    %v143 = vld [vmem:[#allocation5 + $0x1f8] sm:$0xff]
    %v144 = vld [vmem:[#allocation5 + $0x200] sm:$0xff]
    %v145 = vld [vmem:[#allocation5 + $0x208] sm:$0xff]
    %v146 = vld [vmem:[#allocation5 + $0x210] sm:$0xff]
    %v147 = vld [vmem:[#allocation5 + $0x218] sm:$0xff]
    %v148 = vld [vmem:[#allocation5 + $0x220] sm:$0xff]
    %v149 = vld [vmem:[#allocation5 + $0x228] sm:$0xff]
    %v150 = vld [vmem:[#allocation5 + $0x230] sm:$0xff]
    %v151 = vld [vmem:[#allocation5 + $0x238] sm:$0xff]
    %v152 = vld [vmem:[#allocation5 + $0x240] sm:$0xff]
    %v153 = vld [vmem:[#allocation5 + $0x248] sm:$0xff]
    %v154 = vld [vmem:[#allocation5 + $0x250] sm:$0xff]
    %v155 = vld [vmem:[#allocation5 + $0x258] sm:$0xff]
    %v156 = vld [vmem:[#allocation5 + $0x260] sm:$0xff]
    %v157 = vld [vmem:[#allocation5 + $0x268] sm:$0xff]
    %v158 = vld [vmem:[#allocation5 + $0x270] sm:$0xff]
    %v159 = vld [vmem:[#allocation5 + $0x278] sm:$0xff]
    %v160 = vld [vmem:[#allocation5 + $0x280] sm:$0xff]
    %v161 = vld [vmem:[#allocation5 + $0x288] sm:$0xff]
    %v162 = vld [vmem:[#allocation5 + $0x290] sm:$0xff]
    %v163 = vld [vmem:[#allocation5 + $0x298] sm:$0xff]
    %v164 = vld [vmem:[#allocation5 + $0x2a0] sm:$0xff]
    %v165 = vld [vmem:[#allocation5 + $0x2a8] sm:$0xff]
    %v166 = vld [vmem:[#allocation5 + $0x2b0] sm:$0xff]
    %v167 = vld [vmem:[#allocation5 + $0x2b8] sm:$0xff]
    %v168 = vld [vmem:[#allocation5 + $0x2c0] sm:$0xff]
    %v169 = vld [vmem:[#allocation5 + $0x2c8] sm:$0xff]
    %v170 = vld [vmem:[#allocation5 + $0x2d0] sm:$0xff]
    %v171 = vld [vmem:[#allocation5 + $0x2d8] sm:$0xff]
    %v172 = vld [vmem:[#allocation5 + $0x2e0] sm:$0xff]
    %v173 = vld [vmem:[#allocation5 + $0x2e8] sm:$0xff]
    %v174 = vld [vmem:[#allocation5 + $0x2f0] sm:$0xff]
    %v175 = vld [vmem:[#allocation5 + $0x2f8] sm:$0xff]
    %v176 = vld [vmem:[#allocation5 + $0x300] sm:$0xff]
    %v177 = vld [vmem:[#allocation5 + $0x308] sm:$0xff]
    %v178 = vld [vmem:[#allocation5 + $0x310] sm:$0xff]
    %v179 = vld [vmem:[#allocation5 + $0x318] sm:$0xff]
    %v180 = vld [vmem:[#allocation5 + $0x320] sm:$0xff]
    %v181 = vld [vmem:[#allocation5 + $0x328] sm:$0xff]
    %v182 = vld [vmem:[#allocation5 + $0x330] sm:$0xff]
    %v183 = vld [vmem:[#allocation5 + $0x338] sm:$0xff]
    %v184 = vld [vmem:[#allocation5 + $0x340] sm:$0xff]
    %v185 = vld [vmem:[#allocation5 + $0x348] sm:$0xff]
    %v186 = vld [vmem:[#allocation5 + $0x350] sm:$0xff]
    %v187 = vld [vmem:[#allocation5 + $0x358] sm:$0xff]
    %v188 = vld [vmem:[#allocation5 + $0x360] sm:$0xff]
    %v189 = vld [vmem:[#allocation5 + $0x368] sm:$0xff]
    %v190 = vld [vmem:[#allocation5 + $0x370] sm:$0xff]
    %v191 = vld [vmem:[#allocation5 + $0x378] sm:$0xff]
    %v192 = vld [vmem:[#allocation5 + $0x380] sm:$0xff]
    %v193 = vld [vmem:[#allocation5 + $0x388] sm:$0xff]
    %v194 = vld [vmem:[#allocation5 + $0x390] sm:$0xff]
    %v195 = vld [vmem:[#allocation5 + $0x398] sm:$0xff]
    %v196 = vld [vmem:[#allocation5 + $0x3a0] sm:$0xff]
    %v197 = vld [vmem:[#allocation5 + $0x3a8] sm:$0xff]
    %v198 = vld [vmem:[#allocation5 + $0x3b0] sm:$0xff]
    %v199 = vld [vmem:[#allocation5 + $0x3b8] sm:$0xff]
    %v200 = vld [vmem:[#allocation5 + $0x3c0] sm:$0xff]
    %v201 = vld [vmem:[#allocation5 + $0x3c8] sm:$0xff]
    %v202 = vld [vmem:[#allocation5 + $0x3d0] sm:$0xff]
    %v203 = vld [vmem:[#allocation5 + $0x3d8] sm:$0xff]
    %v204 = vld [vmem:[#allocation5 + $0x3e0] sm:$0xff]
    %v205 = vld [vmem:[#allocation5 + $0x3e8] sm:$0xff]
    %v206 = vld [vmem:[#allocation5 + $0x3f0] sm:$0xff]
    %v207 = vld [vmem:[#allocation5 + $0x3f8] sm:$0xff]
    %v208 = vld [vmem:[#allocation2] sm:$0xff]
    %v209 = vld [vmem:[#allocation2 + $0x8] sm:$0xff]
    %v210 = vld [vmem:[%s2] sm:$0xf]
    %v212 = vlaneseq
    %v213 = vshrl.u32 %v212, 7
    %v214 = vsub.s32 0, %v213
    %v215 = vrot.slane %v210, %v214
    %v216 = vlaneseq
    %v217 = vshrl.u32 %v216, 7
    %v218 = vsub.s32 1, %v217
    %v219 = vrot.slane %v210, %v218
    %v220 = vlaneseq
    %v221 = vshrl.u32 %v220, 7
    %v222 = vsub.s32 2, %v221
    %v223 = vrot.slane %v210, %v222
    %v224 = vlaneseq
    %v225 = vshrl.u32 %v224, 7
    %v226 = vsub.s32 3, %v225
    %v227 = vrot.slane %v210, %v226
    %232 = vmatprep.subr.mxu0 %v81
    %233 = vmatpush1.msra.mxu0 %v80
    %234 = vmatprep.subr.mxu0 %v85
    %235 = vmatpush1.msra.mxu0 %v84
    %236 = vmatprep.subr.mxu0 %v89
    %237 = vmatpush1.msra.mxu0 %v88
    %238 = vmatprep.subr.mxu0 %v93
    %239 = vmatpush1.msra.mxu0 %v92
    %240 = vmatprep.subr.mxu0 %v97
    %241 = vmatpush1.msra.mxu0 %v96
    %242 = vmatprep.subr.mxu0 %v101
    %243 = vmatpush1.msra.mxu0 %v100
    %244 = vmatprep.subr.mxu0 %v105
    %245 = vmatpush1.msra.mxu0 %v104
    %246 = vmatprep.subr.mxu0 %v109
    %247 = vmatpush1.msra.mxu0 %v108
    %248 = vmatprep.subr.mxu0 %v113
    %249 = vmatpush1.msra.mxu0 %v112
    %250 = vmatprep.subr.mxu0 %v117
    %251 = vmatpush1.msra.mxu0 %v116
    %252 = vmatprep.subr.mxu0 %v121
    %253 = vmatpush1.msra.mxu0 %v120
    %254 = vmatprep.subr.mxu0 %v125
    %255 = vmatpush1.msra.mxu0 %v124
    %256 = vmatprep.subr.mxu0 %v129
    %257 = vmatpush1.msra.mxu0 %v128
    %258 = vmatprep.subr.mxu0 %v133
    %259 = vmatpush1.msra.mxu0 %v132
    %260 = vmatprep.subr.mxu0 %v137
    %261 = vmatpush1.msra.mxu0 %v136
    %262 = vmatprep.subr.mxu0 %v141
    %263 = vmatpush1.msra.mxu0 %v140
    %264 = vmatprep.subr.mxu0 %v145
    %265 = vmatpush1.msra.mxu0 %v144
    %266 = vmatprep.subr.mxu0 %v149
    %267 = vmatpush1.msra.mxu0 %v148
    %268 = vmatprep.subr.mxu0 %v153
    %269 = vmatpush1.msra.mxu0 %v152
    %270 = vmatprep.subr.mxu0 %v157
    %271 = vmatpush1.msra.mxu0 %v156
    %272 = vmatprep.subr.mxu0 %v161
    %273 = vmatpush1.msra.mxu0 %v160
    %274 = vmatprep.subr.mxu0 %v165
    %275 = vmatpush1.msra.mxu0 %v164
    %276 = vmatprep.subr.mxu0 %v169
    %277 = vmatpush1.msra.mxu0 %v168
    %278 = vmatprep.subr.mxu0 %v173
    %279 = vmatpush1.msra.mxu0 %v172
    %280 = vmatprep.subr.mxu0 %v177
    %281 = vmatpush1.msra.mxu0 %v176
    %282 = vmatprep.subr.mxu0 %v181
    %283 = vmatpush1.msra.mxu0 %v180
    %284 = vmatprep.subr.mxu0 %v185
    %285 = vmatpush1.msra.mxu0 %v184
    %286 = vmatprep.subr.mxu0 %v189
    %287 = vmatpush1.msra.mxu0 %v188
    %288 = vmatprep.subr.mxu0 %v193
    %289 = vmatpush1.msra.mxu0 %v192
    %290 = vmatprep.subr.mxu0 %v197
    %291 = vmatpush1.msra.mxu0 %v196
    %292 = vmatprep.subr.mxu0 %v201
    %293 = vmatpush1.msra.mxu0 %v200
    %294 = vmatprep.subr.mxu0 %v205
    %295 = vmatpush1.msra.mxu0 %v204
    %296 = vmatprep.mubr.f32.mxu0 %v209
    %297 = vmatmul.mubr.f32.gmra.mrb[0].mxu0 %v208
    %v298 = vpop.f32.mrb[0].mxu0
    %v299 = vadd.f32 %v215, %v298
    %v300 = vpop.f32.mrb[0].mxu0
    %v301 = vadd.f32 %v219, %v300
    %302 = vdwg.mxu0
    %303 = vmatprep.subr.mxu0 %v83
    %304 = vmatpush1.msra.mxu0 %v82
    %305 = vmatprep.subr.mxu0 %v87
    %306 = vmatpush1.msra.mxu0 %v86
    %307 = vmatprep.subr.mxu0 %v91
    %308 = vmatpush1.msra.mxu0 %v90
    %309 = vmatprep.subr.mxu0 %v95
    %310 = vmatpush1.msra.mxu0 %v94
    %311 = vmatprep.subr.mxu0 %v99
    %312 = vmatpush1.msra.mxu0 %v98
    %313 = vmatprep.subr.mxu0 %v103
    %314 = vmatpush1.msra.mxu0 %v102
    %315 = vmatprep.subr.mxu0 %v107
    %316 = vmatpush1.msra.mxu0 %v106
    %317 = vmatprep.subr.mxu0 %v111
    %318 = vmatpush1.msra.mxu0 %v110
    %319 = vmatprep.subr.mxu0 %v115
    %320 = vmatpush1.msra.mxu0 %v114
    %321 = vmatprep.subr.mxu0 %v119
    %322 = vmatpush1.msra.mxu0 %v118
    %323 = vmatprep.subr.mxu0 %v123
    %324 = vmatpush1.msra.mxu0 %v122
    %325 = vmatprep.subr.mxu0 %v127
    %326 = vmatpush1.msra.mxu0 %v126
    %327 = vmatprep.subr.mxu0 %v131
    %328 = vmatpush1.msra.mxu0 %v130
    %329 = vmatprep.subr.mxu0 %v135
    %330 = vmatpush1.msra.mxu0 %v134
    %331 = vmatprep.subr.mxu0 %v139
    %332 = vmatpush1.msra.mxu0 %v138
    %333 = vmatprep.subr.mxu0 %v143
    %334 = vmatpush1.msra.mxu0 %v142
    %335 = vmatprep.subr.mxu0 %v147
    %336 = vmatpush1.msra.mxu0 %v146
    %337 = vmatprep.subr.mxu0 %v151
    %338 = vmatpush1.msra.mxu0 %v150
    %339 = vmatprep.subr.mxu0 %v155
    %340 = vmatpush1.msra.mxu0 %v154
    %341 = vmatprep.subr.mxu0 %v159
    %342 = vmatpush1.msra.mxu0 %v158
    %343 = vmatprep.subr.mxu0 %v163
    %344 = vmatpush1.msra.mxu0 %v162
    %345 = vmatprep.subr.mxu0 %v167
    %346 = vmatpush1.msra.mxu0 %v166
    %347 = vmatprep.subr.mxu0 %v171
    %348 = vmatpush1.msra.mxu0 %v170
    %349 = vmatprep.subr.mxu0 %v175
    %350 = vmatpush1.msra.mxu0 %v174
    %351 = vmatprep.subr.mxu0 %v179
    %352 = vmatpush1.msra.mxu0 %v178
    %353 = vmatprep.subr.mxu0 %v183
    %354 = vmatpush1.msra.mxu0 %v182
    %355 = vmatprep.subr.mxu0 %v187
    %356 = vmatpush1.msra.mxu0 %v186
    %357 = vmatprep.subr.mxu0 %v191
    %358 = vmatpush1.msra.mxu0 %v190
    %359 = vmatprep.subr.mxu0 %v195
    %360 = vmatpush1.msra.mxu0 %v194
    %361 = vmatprep.subr.mxu0 %v199
    %362 = vmatpush1.msra.mxu0 %v198
    %363 = vmatprep.subr.mxu0 %v203
    %364 = vmatpush1.msra.mxu0 %v202
    %365 = vmatprep.subr.mxu0 %v207
    %366 = vmatpush1.msra.mxu0 %v206
    %367 = vmatprep.mubr.f32.mxu0 %v209
    %368 = vmatmul.mubr.f32.gmra.mrb[0].mxu0 %v208
    %v369 = vpop.f32.mrb[0].mxu0
    %v370 = vadd.f32 %v223, %v369
    %v371 = vpop.f32.mrb[0].mxu0
    %v372 = vadd.f32 %v227, %v371
    %373 = vdwg.mxu0
    %v374 = vld [vmem:[#allocation7] sm:$0xff]
    %v375 = vld [vmem:[#allocation7 + $0x8] sm:$0xff]
    %v376 = vld [vmem:[#allocation7 + $0x10] sm:$0xff]
    %v377 = vld [vmem:[#allocation7 + $0x18] sm:$0xff]
    %v378 = vld [vmem:[#allocation7 + $0x20] sm:$0xff]
    %v379 = vld [vmem:[#allocation7 + $0x28] sm:$0xff]
    %v380 = vld [vmem:[#allocation7 + $0x30] sm:$0xff]
    %v381 = vld [vmem:[#allocation7 + $0x38] sm:$0xff]
    %v382 = vld [vmem:[#allocation7 + $0x40] sm:$0xff]
    %v383 = vld [vmem:[#allocation7 + $0x48] sm:$0xff]
    %v384 = vld [vmem:[#allocation7 + $0x50] sm:$0xff]
    %v385 = vld [vmem:[#allocation7 + $0x58] sm:$0xff]
    %v386 = vld [vmem:[#allocation7 + $0x60] sm:$0xff]
    %v387 = vld [vmem:[#allocation7 + $0x68] sm:$0xff]
    %v388 = vld [vmem:[#allocation7 + $0x70] sm:$0xff]
    %v389 = vld [vmem:[#allocation7 + $0x78] sm:$0xff]
    %v390 = vld [vmem:[#allocation7 + $0x80] sm:$0xff]
    %v391 = vld [vmem:[#allocation7 + $0x88] sm:$0xff]
    %v392 = vld [vmem:[#allocation7 + $0x90] sm:$0xff]
    %v393 = vld [vmem:[#allocation7 + $0x98] sm:$0xff]
    %v394 = vld [vmem:[#allocation7 + $0xa0] sm:$0xff]
    %v395 = vld [vmem:[#allocation7 + $0xa8] sm:$0xff]
    %v396 = vld [vmem:[#allocation7 + $0xb0] sm:$0xff]
    %v397 = vld [vmem:[#allocation7 + $0xb8] sm:$0xff]
    %v398 = vld [vmem:[#allocation7 + $0xc0] sm:$0xff]
    %v399 = vld [vmem:[#allocation7 + $0xc8] sm:$0xff]
    %v400 = vld [vmem:[#allocation7 + $0xd0] sm:$0xff]
    %v401 = vld [vmem:[#allocation7 + $0xd8] sm:$0xff]
    %v402 = vld [vmem:[#allocation7 + $0xe0] sm:$0xff]
    %v403 = vld [vmem:[#allocation7 + $0xe8] sm:$0xff]
    %v404 = vld [vmem:[#allocation7 + $0xf0] sm:$0xff]
    %v405 = vld [vmem:[#allocation7 + $0xf8] sm:$0xff]
    %v406 = vld [vmem:[#allocation7 + $0x100] sm:$0xff]
    %v407 = vld [vmem:[#allocation7 + $0x108] sm:$0xff]
    %v408 = vld [vmem:[#allocation7 + $0x110] sm:$0xff]
    %v409 = vld [vmem:[#allocation7 + $0x118] sm:$0xff]
    %v410 = vld [vmem:[#allocation7 + $0x120] sm:$0xff]
    %v411 = vld [vmem:[#allocation7 + $0x128] sm:$0xff]
    %v412 = vld [vmem:[#allocation7 + $0x130] sm:$0xff]
    %v413 = vld [vmem:[#allocation7 + $0x138] sm:$0xff]
    %v414 = vld [vmem:[#allocation7 + $0x140] sm:$0xff]
    %v415 = vld [vmem:[#allocation7 + $0x148] sm:$0xff]
    %v416 = vld [vmem:[#allocation7 + $0x150] sm:$0xff]
    %v417 = vld [vmem:[#allocation7 + $0x158] sm:$0xff]
    %v418 = vld [vmem:[#allocation7 + $0x160] sm:$0xff]
    %v419 = vld [vmem:[#allocation7 + $0x168] sm:$0xff]
    %v420 = vld [vmem:[#allocation7 + $0x170] sm:$0xff]
    %v421 = vld [vmem:[#allocation7 + $0x178] sm:$0xff]
    %v422 = vld [vmem:[#allocation7 + $0x180] sm:$0xff]
    %v423 = vld [vmem:[#allocation7 + $0x188] sm:$0xff]
    %v424 = vld [vmem:[#allocation7 + $0x190] sm:$0xff]
    %v425 = vld [vmem:[#allocation7 + $0x198] sm:$0xff]
    %v426 = vld [vmem:[#allocation7 + $0x1a0] sm:$0xff]
    %v427 = vld [vmem:[#allocation7 + $0x1a8] sm:$0xff]
    %v428 = vld [vmem:[#allocation7 + $0x1b0] sm:$0xff]
    %v429 = vld [vmem:[#allocation7 + $0x1b8] sm:$0xff]
    %v430 = vld [vmem:[#allocation7 + $0x1c0] sm:$0xff]
    %v431 = vld [vmem:[#allocation7 + $0x1c8] sm:$0xff]
    %v432 = vld [vmem:[#allocation7 + $0x1d0] sm:$0xff]
    %v433 = vld [vmem:[#allocation7 + $0x1d8] sm:$0xff]
    %v434 = vld [vmem:[#allocation7 + $0x1e0] sm:$0xff]
    %v435 = vld [vmem:[#allocation7 + $0x1e8] sm:$0xff]
    %v436 = vld [vmem:[#allocation7 + $0x1f0] sm:$0xff]
    %v437 = vld [vmem:[#allocation7 + $0x1f8] sm:$0xff]
    %v438 = vld [vmem:[#allocation7 + $0x200] sm:$0xff]
    %v439 = vld [vmem:[#allocation7 + $0x208] sm:$0xff]
    %v440 = vld [vmem:[#allocation7 + $0x210] sm:$0xff]
    %v441 = vld [vmem:[#allocation7 + $0x218] sm:$0xff]
    %v442 = vld [vmem:[#allocation7 + $0x220] sm:$0xff]
    %v443 = vld [vmem:[#allocation7 + $0x228] sm:$0xff]
    %v444 = vld [vmem:[#allocation7 + $0x230] sm:$0xff]
    %v445 = vld [vmem:[#allocation7 + $0x238] sm:$0xff]
    %v446 = vld [vmem:[#allocation7 + $0x240] sm:$0xff]
    %v447 = vld [vmem:[#allocation7 + $0x248] sm:$0xff]
    %v448 = vld [vmem:[#allocation7 + $0x250] sm:$0xff]
    %v449 = vld [vmem:[#allocation7 + $0x258] sm:$0xff]
    %v450 = vld [vmem:[#allocation7 + $0x260] sm:$0xff]
    %v451 = vld [vmem:[#allocation7 + $0x268] sm:$0xff]
    %v452 = vld [vmem:[#allocation7 + $0x270] sm:$0xff]
    %v453 = vld [vmem:[#allocation7 + $0x278] sm:$0xff]
    %v454 = vld [vmem:[#allocation7 + $0x280] sm:$0xff]
    %v455 = vld [vmem:[#allocation7 + $0x288] sm:$0xff]
    %v456 = vld [vmem:[#allocation7 + $0x290] sm:$0xff]
    %v457 = vld [vmem:[#allocation7 + $0x298] sm:$0xff]
    %v458 = vld [vmem:[#allocation7 + $0x2a0] sm:$0xff]
    %v459 = vld [vmem:[#allocation7 + $0x2a8] sm:$0xff]
    %v460 = vld [vmem:[#allocation7 + $0x2b0] sm:$0xff]
    %v461 = vld [vmem:[#allocation7 + $0x2b8] sm:$0xff]
    %v462 = vld [vmem:[#allocation7 + $0x2c0] sm:$0xff]
    %v463 = vld [vmem:[#allocation7 + $0x2c8] sm:$0xff]
    %v464 = vld [vmem:[#allocation7 + $0x2d0] sm:$0xff]
    %v465 = vld [vmem:[#allocation7 + $0x2d8] sm:$0xff]
    %v466 = vld [vmem:[#allocation7 + $0x2e0] sm:$0xff]
    %v467 = vld [vmem:[#allocation7 + $0x2e8] sm:$0xff]
    %v468 = vld [vmem:[#allocation7 + $0x2f0] sm:$0xff]
    %v469 = vld [vmem:[#allocation7 + $0x2f8] sm:$0xff]
    %v470 = vld [vmem:[#allocation7 + $0x300] sm:$0xff]
    %v471 = vld [vmem:[#allocation7 + $0x308] sm:$0xff]
    %v472 = vld [vmem:[#allocation7 + $0x310] sm:$0xff]
    %v473 = vld [vmem:[#allocation7 + $0x318] sm:$0xff]
    %v474 = vld [vmem:[#allocation7 + $0x320] sm:$0xff]
    %v475 = vld [vmem:[#allocation7 + $0x328] sm:$0xff]
    %v476 = vld [vmem:[#allocation7 + $0x330] sm:$0xff]
    %v477 = vld [vmem:[#allocation7 + $0x338] sm:$0xff]
    %v478 = vld [vmem:[#allocation7 + $0x340] sm:$0xff]
    %v479 = vld [vmem:[#allocation7 + $0x348] sm:$0xff]
    %v480 = vld [vmem:[#allocation7 + $0x350] sm:$0xff]
    %v481 = vld [vmem:[#allocation7 + $0x358] sm:$0xff]
    %v482 = vld [vmem:[#allocation7 + $0x360] sm:$0xff]
    %v483 = vld [vmem:[#allocation7 + $0x368] sm:$0xff]
    %v484 = vld [vmem:[#allocation7 + $0x370] sm:$0xff]
    %v485 = vld [vmem:[#allocation7 + $0x378] sm:$0xff]
    %v486 = vld [vmem:[#allocation7 + $0x380] sm:$0xff]
    %v487 = vld [vmem:[#allocation7 + $0x388] sm:$0xff]
    %v488 = vld [vmem:[#allocation7 + $0x390] sm:$0xff]
    %v489 = vld [vmem:[#allocation7 + $0x398] sm:$0xff]
    %v490 = vld [vmem:[#allocation7 + $0x3a0] sm:$0xff]
    %v491 = vld [vmem:[#allocation7 + $0x3a8] sm:$0xff]
    %v492 = vld [vmem:[#allocation7 + $0x3b0] sm:$0xff]
    %v493 = vld [vmem:[#allocation7 + $0x3b8] sm:$0xff]
    %v494 = vld [vmem:[#allocation7 + $0x3c0] sm:$0xff]
    %v495 = vld [vmem:[#allocation7 + $0x3c8] sm:$0xff]
    %v496 = vld [vmem:[#allocation7 + $0x3d0] sm:$0xff]
    %v497 = vld [vmem:[#allocation7 + $0x3d8] sm:$0xff]
    %v498 = vld [vmem:[#allocation7 + $0x3e0] sm:$0xff]
    %v499 = vld [vmem:[#allocation7 + $0x3e8] sm:$0xff]
    %v500 = vld [vmem:[#allocation7 + $0x3f0] sm:$0xff]
    %v501 = vld [vmem:[#allocation7 + $0x3f8] sm:$0xff]
    %v502 = vld [vmem:[#allocation7 + $0x400] sm:$0xff]
    %v503 = vld [vmem:[#allocation7 + $0x408] sm:$0xff]
    %v504 = vld [vmem:[#allocation7 + $0x410] sm:$0xff]
    %v505 = vld [vmem:[#allocation7 + $0x418] sm:$0xff]
    %v506 = vld [vmem:[#allocation7 + $0x420] sm:$0xff]
    %v507 = vld [vmem:[#allocation7 + $0x428] sm:$0xff]
    %v508 = vld [vmem:[#allocation7 + $0x430] sm:$0xff]
    %v509 = vld [vmem:[#allocation7 + $0x438] sm:$0xff]
    %v510 = vld [vmem:[#allocation7 + $0x440] sm:$0xff]
    %v511 = vld [vmem:[#allocation7 + $0x448] sm:$0xff]
    %v512 = vld [vmem:[#allocation7 + $0x450] sm:$0xff]
    %v513 = vld [vmem:[#allocation7 + $0x458] sm:$0xff]
    %v514 = vld [vmem:[#allocation7 + $0x460] sm:$0xff]
    %v515 = vld [vmem:[#allocation7 + $0x468] sm:$0xff]
    %v516 = vld [vmem:[#allocation7 + $0x470] sm:$0xff]
    %v517 = vld [vmem:[#allocation7 + $0x478] sm:$0xff]
    %v518 = vld [vmem:[#allocation7 + $0x480] sm:$0xff]
    %v519 = vld [vmem:[#allocation7 + $0x488] sm:$0xff]
    %v520 = vld [vmem:[#allocation7 + $0x490] sm:$0xff]
    %v521 = vld [vmem:[#allocation7 + $0x498] sm:$0xff]
    %v522 = vld [vmem:[#allocation7 + $0x4a0] sm:$0xff]
    %v523 = vld [vmem:[#allocation7 + $0x4a8] sm:$0xff]
    %v524 = vld [vmem:[#allocation7 + $0x4b0] sm:$0xff]
    %v525 = vld [vmem:[#allocation7 + $0x4b8] sm:$0xff]
    %v526 = vld [vmem:[#allocation7 + $0x4c0] sm:$0xff]
    %v527 = vld [vmem:[#allocation7 + $0x4c8] sm:$0xff]
    %v528 = vld [vmem:[#allocation7 + $0x4d0] sm:$0xff]
    %v529 = vld [vmem:[#allocation7 + $0x4d8] sm:$0xff]
    %v530 = vld [vmem:[#allocation7 + $0x4e0] sm:$0xff]
    %v531 = vld [vmem:[#allocation7 + $0x4e8] sm:$0xff]
    %v532 = vld [vmem:[#allocation7 + $0x4f0] sm:$0xff]
    %v533 = vld [vmem:[#allocation7 + $0x4f8] sm:$0xff]
    %v534 = vld [vmem:[#allocation7 + $0x500] sm:$0xff]
    %v535 = vld [vmem:[#allocation7 + $0x508] sm:$0xff]
    %v536 = vld [vmem:[#allocation7 + $0x510] sm:$0xff]
    %v537 = vld [vmem:[#allocation7 + $0x518] sm:$0xff]
    %v538 = vld [vmem:[#allocation7 + $0x520] sm:$0xff]
    %v539 = vld [vmem:[#allocation7 + $0x528] sm:$0xff]
    %v540 = vld [vmem:[#allocation7 + $0x530] sm:$0xff]
    %v541 = vld [vmem:[#allocation7 + $0x538] sm:$0xff]
    %v542 = vld [vmem:[#allocation7 + $0x540] sm:$0xff]
    %v543 = vld [vmem:[#allocation7 + $0x548] sm:$0xff]
    %v544 = vld [vmem:[#allocation7 + $0x550] sm:$0xff]
    %v545 = vld [vmem:[#allocation7 + $0x558] sm:$0xff]
    %v546 = vld [vmem:[#allocation7 + $0x560] sm:$0xff]
    %v547 = vld [vmem:[#allocation7 + $0x568] sm:$0xff]
    %v548 = vld [vmem:[#allocation7 + $0x570] sm:$0xff]
    %v549 = vld [vmem:[#allocation7 + $0x578] sm:$0xff]
    %v550 = vld [vmem:[#allocation7 + $0x580] sm:$0xff]
    %v551 = vld [vmem:[#allocation7 + $0x588] sm:$0xff]
    %v552 = vld [vmem:[#allocation7 + $0x590] sm:$0xff]
    %v553 = vld [vmem:[#allocation7 + $0x598] sm:$0xff]
    %v554 = vld [vmem:[#allocation7 + $0x5a0] sm:$0xff]
    %v555 = vld [vmem:[#allocation7 + $0x5a8] sm:$0xff]
    %v556 = vld [vmem:[#allocation7 + $0x5b0] sm:$0xff]
    %v557 = vld [vmem:[#allocation7 + $0x5b8] sm:$0xff]
    %v558 = vld [vmem:[#allocation7 + $0x5c0] sm:$0xff]
    %v559 = vld [vmem:[#allocation7 + $0x5c8] sm:$0xff]
    %v560 = vld [vmem:[#allocation7 + $0x5d0] sm:$0xff]
    %v561 = vld [vmem:[#allocation7 + $0x5d8] sm:$0xff]
    %v562 = vld [vmem:[#allocation7 + $0x5e0] sm:$0xff]
    %v563 = vld [vmem:[#allocation7 + $0x5e8] sm:$0xff]
    %v564 = vld [vmem:[#allocation7 + $0x5f0] sm:$0xff]
    %v565 = vld [vmem:[#allocation7 + $0x5f8] sm:$0xff]
    %v566 = vld [vmem:[#allocation7 + $0x600] sm:$0xff]
    %v567 = vld [vmem:[#allocation7 + $0x608] sm:$0xff]
    %v568 = vld [vmem:[#allocation7 + $0x610] sm:$0xff]
    %v569 = vld [vmem:[#allocation7 + $0x618] sm:$0xff]
    %v570 = vld [vmem:[#allocation7 + $0x620] sm:$0xff]
    %v571 = vld [vmem:[#allocation7 + $0x628] sm:$0xff]
    %v572 = vld [vmem:[#allocation7 + $0x630] sm:$0xff]
    %v573 = vld [vmem:[#allocation7 + $0x638] sm:$0xff]
    %v574 = vld [vmem:[#allocation7 + $0x640] sm:$0xff]
    %v575 = vld [vmem:[#allocation7 + $0x648] sm:$0xff]
    %v576 = vld [vmem:[#allocation7 + $0x650] sm:$0xff]
    %v577 = vld [vmem:[#allocation7 + $0x658] sm:$0xff]
    %v578 = vld [vmem:[#allocation7 + $0x660] sm:$0xff]
    %v579 = vld [vmem:[#allocation7 + $0x668] sm:$0xff]
    %v580 = vld [vmem:[#allocation7 + $0x670] sm:$0xff]
    %v581 = vld [vmem:[#allocation7 + $0x678] sm:$0xff]
    %v582 = vld [vmem:[#allocation7 + $0x680] sm:$0xff]
    %v583 = vld [vmem:[#allocation7 + $0x688] sm:$0xff]
    %v584 = vld [vmem:[#allocation7 + $0x690] sm:$0xff]
    %v585 = vld [vmem:[#allocation7 + $0x698] sm:$0xff]
    %v586 = vld [vmem:[#allocation7 + $0x6a0] sm:$0xff]
    %v587 = vld [vmem:[#allocation7 + $0x6a8] sm:$0xff]
    %v588 = vld [vmem:[#allocation7 + $0x6b0] sm:$0xff]
    %v589 = vld [vmem:[#allocation7 + $0x6b8] sm:$0xff]
    %v590 = vld [vmem:[#allocation7 + $0x6c0] sm:$0xff]
    %v591 = vld [vmem:[#allocation7 + $0x6c8] sm:$0xff]
    %v592 = vld [vmem:[#allocation7 + $0x6d0] sm:$0xff]
    %v593 = vld [vmem:[#allocation7 + $0x6d8] sm:$0xff]
    %v594 = vld [vmem:[#allocation7 + $0x6e0] sm:$0xff]
    %v595 = vld [vmem:[#allocation7 + $0x6e8] sm:$0xff]
    %v596 = vld [vmem:[#allocation7 + $0x6f0] sm:$0xff]
    %v597 = vld [vmem:[#allocation7 + $0x6f8] sm:$0xff]
    %v598 = vld [vmem:[#allocation7 + $0x700] sm:$0xff]
    %v599 = vld [vmem:[#allocation7 + $0x708] sm:$0xff]
    %v600 = vld [vmem:[#allocation7 + $0x710] sm:$0xff]
    %v601 = vld [vmem:[#allocation7 + $0x718] sm:$0xff]
    %v602 = vld [vmem:[#allocation7 + $0x720] sm:$0xff]
    %v603 = vld [vmem:[#allocation7 + $0x728] sm:$0xff]
    %v604 = vld [vmem:[#allocation7 + $0x730] sm:$0xff]
    %v605 = vld [vmem:[#allocation7 + $0x738] sm:$0xff]
    %v606 = vld [vmem:[#allocation7 + $0x740] sm:$0xff]
    %v607 = vld [vmem:[#allocation7 + $0x748] sm:$0xff]
    %v608 = vld [vmem:[#allocation7 + $0x750] sm:$0xff]
    %v609 = vld [vmem:[#allocation7 + $0x758] sm:$0xff]
    %v610 = vld [vmem:[#allocation7 + $0x760] sm:$0xff]
    %v611 = vld [vmem:[#allocation7 + $0x768] sm:$0xff]
    %v612 = vld [vmem:[#allocation7 + $0x770] sm:$0xff]
    %v613 = vld [vmem:[#allocation7 + $0x778] sm:$0xff]
    %v614 = vld [vmem:[#allocation7 + $0x780] sm:$0xff]
    %v615 = vld [vmem:[#allocation7 + $0x788] sm:$0xff]
    %v616 = vld [vmem:[#allocation7 + $0x790] sm:$0xff]
    %v617 = vld [vmem:[#allocation7 + $0x798] sm:$0xff]
    %v618 = vld [vmem:[#allocation7 + $0x7a0] sm:$0xff]
    %v619 = vld [vmem:[#allocation7 + $0x7a8] sm:$0xff]
    %v620 = vld [vmem:[#allocation7 + $0x7b0] sm:$0xff]
    %v621 = vld [vmem:[#allocation7 + $0x7b8] sm:$0xff]
    %v622 = vld [vmem:[#allocation7 + $0x7c0] sm:$0xff]
    %v623 = vld [vmem:[#allocation7 + $0x7c8] sm:$0xff]
    %v624 = vld [vmem:[#allocation7 + $0x7d0] sm:$0xff]
    %v625 = vld [vmem:[#allocation7 + $0x7d8] sm:$0xff]
    %v626 = vld [vmem:[#allocation7 + $0x7e0] sm:$0xff]
    %v627 = vld [vmem:[#allocation7 + $0x7e8] sm:$0xff]
    %v628 = vld [vmem:[#allocation7 + $0x7f0] sm:$0xff]
    %v629 = vld [vmem:[#allocation7 + $0x7f8] sm:$0xff]
    %v630 = vld [vmem:[%s4] sm:$0xf]
    %v632 = vlaneseq
    %v633 = vshrl.u32 %v632, 7
    %v634 = vsub.s32 0, %v633
    %v635 = vrot.slane %v630, %v634
    %v636 = vlaneseq
    %v637 = vshrl.u32 %v636, 7
    %v638 = vsub.s32 1, %v637
    %v639 = vrot.slane %v630, %v638
    %v640 = vlaneseq
    %v641 = vshrl.u32 %v640, 7
    %v642 = vsub.s32 2, %v641
    %v643 = vrot.slane %v630, %v642
    %v644 = vlaneseq
    %v645 = vshrl.u32 %v644, 7
    %v646 = vsub.s32 3, %v645
    %v647 = vrot.slane %v630, %v646
    %652 = vmatprep.subr.mxu0 %v375
    %653 = vmatpush1.msra.mxu0 %v374
    %654 = vmatprep.subr.mxu0 %v379
    %655 = vmatpush1.msra.mxu0 %v378
    %656 = vmatprep.subr.mxu0 %v383
    %657 = vmatpush1.msra.mxu0 %v382
    %658 = vmatprep.subr.mxu0 %v387
    %659 = vmatpush1.msra.mxu0 %v386
    %660 = vmatprep.subr.mxu0 %v391
    %661 = vmatpush1.msra.mxu0 %v390
    %662 = vmatprep.subr.mxu0 %v395
    %663 = vmatpush1.msra.mxu0 %v394
    %664 = vmatprep.subr.mxu0 %v399
    %665 = vmatpush1.msra.mxu0 %v398
    %666 = vmatprep.subr.mxu0 %v403
    %667 = vmatpush1.msra.mxu0 %v402
    %668 = vmatprep.subr.mxu0 %v407
    %669 = vmatpush1.msra.mxu0 %v406
    %670 = vmatprep.subr.mxu0 %v411
    %671 = vmatpush1.msra.mxu0 %v410
    %672 = vmatprep.subr.mxu0 %v415
    %673 = vmatpush1.msra.mxu0 %v414
    %674 = vmatprep.subr.mxu0 %v419
    %675 = vmatpush1.msra.mxu0 %v418
    %676 = vmatprep.subr.mxu0 %v423
    %677 = vmatpush1.msra.mxu0 %v422
    %678 = vmatprep.subr.mxu0 %v427
    %679 = vmatpush1.msra.mxu0 %v426
    %680 = vmatprep.subr.mxu0 %v431
    %681 = vmatpush1.msra.mxu0 %v430
    %682 = vmatprep.subr.mxu0 %v435
    %683 = vmatpush1.msra.mxu0 %v434
    %684 = vmatprep.subr.mxu0 %v439
    %685 = vmatpush1.msra.mxu0 %v438
    %686 = vmatprep.subr.mxu0 %v443
    %687 = vmatpush1.msra.mxu0 %v442
    %688 = vmatprep.subr.mxu0 %v447
    %689 = vmatpush1.msra.mxu0 %v446
    %690 = vmatprep.subr.mxu0 %v451
    %691 = vmatpush1.msra.mxu0 %v450
    %692 = vmatprep.subr.mxu0 %v455
    %693 = vmatpush1.msra.mxu0 %v454
    %694 = vmatprep.subr.mxu0 %v459
    %695 = vmatpush1.msra.mxu0 %v458
    %696 = vmatprep.subr.mxu0 %v463
    %697 = vmatpush1.msra.mxu0 %v462
    %698 = vmatprep.subr.mxu0 %v467
    %699 = vmatpush1.msra.mxu0 %v466
    %700 = vmatprep.subr.mxu0 %v471
    %701 = vmatpush1.msra.mxu0 %v470
    %702 = vmatprep.subr.mxu0 %v475
    %703 = vmatpush1.msra.mxu0 %v474
    %704 = vmatprep.subr.mxu0 %v479
    %705 = vmatpush1.msra.mxu0 %v478
    %706 = vmatprep.subr.mxu0 %v483
    %707 = vmatpush1.msra.mxu0 %v482
    %708 = vmatprep.subr.mxu0 %v487
    %709 = vmatpush1.msra.mxu0 %v486
    %710 = vmatprep.subr.mxu0 %v491
    %711 = vmatpush1.msra.mxu0 %v490
    %712 = vmatprep.subr.mxu0 %v495
    %713 = vmatpush1.msra.mxu0 %v494
    %714 = vmatprep.subr.mxu0 %v499
    %715 = vmatpush1.msra.mxu0 %v498
    %716 = vmatprep.mubr.f32.mxu0 %v301
    %717 = vmatmul.mubr.f32.gmra.mrb[0].mxu0 %v299
    %v718 = vpop.f32.mrb[0].mxu0
    %v719 = vadd.f32 %v635, %v718
    %v720 = vpop.f32.mrb[0].mxu0
    %v721 = vadd.f32 %v639, %v720
    %722 = vdwg.mxu0
    %723 = vmatprep.subr.mxu0 %v503
    %724 = vmatpush1.msra.mxu0 %v502
    %725 = vmatprep.subr.mxu0 %v507
    %726 = vmatpush1.msra.mxu0 %v506
    %727 = vmatprep.subr.mxu0 %v511
    %728 = vmatpush1.msra.mxu0 %v510
    %729 = vmatprep.subr.mxu0 %v515
    %730 = vmatpush1.msra.mxu0 %v514
    %731 = vmatprep.subr.mxu0 %v519
    %732 = vmatpush1.msra.mxu0 %v518
    %733 = vmatprep.subr.mxu0 %v523
    %734 = vmatpush1.msra.mxu0 %v522
    %735 = vmatprep.subr.mxu0 %v527
    %736 = vmatpush1.msra.mxu0 %v526
    %737 = vmatprep.subr.mxu0 %v531
    %738 = vmatpush1.msra.mxu0 %v530
    %739 = vmatprep.subr.mxu0 %v535
    %740 = vmatpush1.msra.mxu0 %v534
    %741 = vmatprep.subr.mxu0 %v539
    %742 = vmatpush1.msra.mxu0 %v538
    %743 = vmatprep.subr.mxu0 %v543
    %744 = vmatpush1.msra.mxu0 %v542
    %745 = vmatprep.subr.mxu0 %v547
    %746 = vmatpush1.msra.mxu0 %v546
    %747 = vmatprep.subr.mxu0 %v551
    %748 = vmatpush1.msra.mxu0 %v550
    %749 = vmatprep.subr.mxu0 %v555
    %750 = vmatpush1.msra.mxu0 %v554
    %751 = vmatprep.subr.mxu0 %v559
    %752 = vmatpush1.msra.mxu0 %v558
    %753 = vmatprep.subr.mxu0 %v563
    %754 = vmatpush1.msra.mxu0 %v562
    %755 = vmatprep.subr.mxu0 %v567
    %756 = vmatpush1.msra.mxu0 %v566
    %757 = vmatprep.subr.mxu0 %v571
    %758 = vmatpush1.msra.mxu0 %v570
    %759 = vmatprep.subr.mxu0 %v575
    %760 = vmatpush1.msra.mxu0 %v574
    %761 = vmatprep.subr.mxu0 %v579
    %762 = vmatpush1.msra.mxu0 %v578
    %763 = vmatprep.subr.mxu0 %v583
    %764 = vmatpush1.msra.mxu0 %v582
    %765 = vmatprep.subr.mxu0 %v587
    %766 = vmatpush1.msra.mxu0 %v586
    %767 = vmatprep.subr.mxu0 %v591
    %768 = vmatpush1.msra.mxu0 %v590
    %769 = vmatprep.subr.mxu0 %v595
    %770 = vmatpush1.msra.mxu0 %v594
    %771 = vmatprep.subr.mxu0 %v599
    %772 = vmatpush1.msra.mxu0 %v598
    %773 = vmatprep.subr.mxu0 %v603
    %774 = vmatpush1.msra.mxu0 %v602
    %775 = vmatprep.subr.mxu0 %v607
    %776 = vmatpush1.msra.mxu0 %v606
    %777 = vmatprep.subr.mxu0 %v611
    %778 = vmatpush1.msra.mxu0 %v610
    %779 = vmatprep.subr.mxu0 %v615
    %780 = vmatpush1.msra.mxu0 %v614
    %781 = vmatprep.subr.mxu0 %v619
    %782 = vmatpush1.msra.mxu0 %v618
    %783 = vmatprep.subr.mxu0 %v623
    %784 = vmatpush1.msra.mxu0 %v622
    %785 = vmatprep.subr.mxu0 %v627
    %786 = vmatpush1.msra.mxu0 %v626
    %787 = vmatprep.mubr.f32.mxu0 %v372
    %788 = vmatmul.mubr.f32.gmra.mrb[0].mxu0 %v370
    %v789 = vpop.f32.mrb[0].mxu0
    %v790 = vadd.f32 %v719, %v789
    %v791 = vpop.f32.mrb[0].mxu0
    %v792 = vadd.f32 %v721, %v791
    %793 = vdwg.mxu0
    %794 = vmatprep.subr.mxu0 %v377
    %795 = vmatpush1.msra.mxu0 %v376
    %796 = vmatprep.subr.mxu0 %v381
    %797 = vmatpush1.msra.mxu0 %v380
    %798 = vmatprep.subr.mxu0 %v385
    %799 = vmatpush1.msra.mxu0 %v384
    %800 = vmatprep.subr.mxu0 %v389
    %801 = vmatpush1.msra.mxu0 %v388
    %802 = vmatprep.subr.mxu0 %v393
    %803 = vmatpush1.msra.mxu0 %v392
    %804 = vmatprep.subr.mxu0 %v397
    %805 = vmatpush1.msra.mxu0 %v396
    %806 = vmatprep.subr.mxu0 %v401
    %807 = vmatpush1.msra.mxu0 %v400
    %808 = vmatprep.subr.mxu0 %v405
    %809 = vmatpush1.msra.mxu0 %v404
    %810 = vmatprep.subr.mxu0 %v409
    %811 = vmatpush1.msra.mxu0 %v408
    %812 = vmatprep.subr.mxu0 %v413
    %813 = vmatpush1.msra.mxu0 %v412
    %814 = vmatprep.subr.mxu0 %v417
    %815 = vmatpush1.msra.mxu0 %v416
    %816 = vmatprep.subr.mxu0 %v421
    %817 = vmatpush1.msra.mxu0 %v420
    %818 = vmatprep.subr.mxu0 %v425
    %819 = vmatpush1.msra.mxu0 %v424
    %820 = vmatprep.subr.mxu0 %v429
    %821 = vmatpush1.msra.mxu0 %v428
    %822 = vmatprep.subr.mxu0 %v433
    %823 = vmatpush1.msra.mxu0 %v432
    %824 = vmatprep.subr.mxu0 %v437
    %825 = vmatpush1.msra.mxu0 %v436
    %826 = vmatprep.subr.mxu0 %v441
    %827 = vmatpush1.msra.mxu0 %v440
    %828 = vmatprep.subr.mxu0 %v445
    %829 = vmatpush1.msra.mxu0 %v444
    %830 = vmatprep.subr.mxu0 %v449
    %831 = vmatpush1.msra.mxu0 %v448
    %832 = vmatprep.subr.mxu0 %v453
    %833 = vmatpush1.msra.mxu0 %v452
    %834 = vmatprep.subr.mxu0 %v457
    %835 = vmatpush1.msra.mxu0 %v456
    %836 = vmatprep.subr.mxu0 %v461
    %837 = vmatpush1.msra.mxu0 %v460
    %838 = vmatprep.subr.mxu0 %v465
    %839 = vmatpush1.msra.mxu0 %v464
    %840 = vmatprep.subr.mxu0 %v469
    %841 = vmatpush1.msra.mxu0 %v468
    %842 = vmatprep.subr.mxu0 %v473
    %843 = vmatpush1.msra.mxu0 %v472
    %844 = vmatprep.subr.mxu0 %v477
    %845 = vmatpush1.msra.mxu0 %v476
    %846 = vmatprep.subr.mxu0 %v481
    %847 = vmatpush1.msra.mxu0 %v480
    %848 = vmatprep.subr.mxu0 %v485
    %849 = vmatpush1.msra.mxu0 %v484
    %850 = vmatprep.subr.mxu0 %v489
    %851 = vmatpush1.msra.mxu0 %v488
    %852 = vmatprep.subr.mxu0 %v493
    %853 = vmatpush1.msra.mxu0 %v492
    %854 = vmatprep.subr.mxu0 %v497
    %855 = vmatpush1.msra.mxu0 %v496
    %856 = vmatprep.subr.mxu0 %v501
    %857 = vmatpush1.msra.mxu0 %v500
    %858 = vmatprep.mubr.f32.mxu0 %v301
    %859 = vmatmul.mubr.f32.gmra.mrb[0].mxu0 %v299
    %v860 = vpop.f32.mrb[0].mxu0
    %v861 = vadd.f32 %v643, %v860
    %v862 = vpop.f32.mrb[0].mxu0
    %v863 = vadd.f32 %v647, %v862
    %864 = vdwg.mxu0
    %865 = vmatprep.subr.mxu0 %v505
    %866 = vmatpush1.msra.mxu0 %v504
    %867 = vmatprep.subr.mxu0 %v509
    %868 = vmatpush1.msra.mxu0 %v508
    %869 = vmatprep.subr.mxu0 %v513
    %870 = vmatpush1.msra.mxu0 %v512
    %871 = vmatprep.subr.mxu0 %v517
    %872 = vmatpush1.msra.mxu0 %v516
    %873 = vmatprep.subr.mxu0 %v521
    %874 = vmatpush1.msra.mxu0 %v520
    %875 = vmatprep.subr.mxu0 %v525
    %876 = vmatpush1.msra.mxu0 %v524
    %877 = vmatprep.subr.mxu0 %v529
    %878 = vmatpush1.msra.mxu0 %v528
    %879 = vmatprep.subr.mxu0 %v533
    %880 = vmatpush1.msra.mxu0 %v532
    %881 = vmatprep.subr.mxu0 %v537
    %882 = vmatpush1.msra.mxu0 %v536
    %883 = vmatprep.subr.mxu0 %v541
    %884 = vmatpush1.msra.mxu0 %v540
    %885 = vmatprep.subr.mxu0 %v545
    %886 = vmatpush1.msra.mxu0 %v544
    %887 = vmatprep.subr.mxu0 %v549
    %888 = vmatpush1.msra.mxu0 %v548
    %889 = vmatprep.subr.mxu0 %v553
    %890 = vmatpush1.msra.mxu0 %v552
    %891 = vmatprep.subr.mxu0 %v557
    %892 = vmatpush1.msra.mxu0 %v556
    %893 = vmatprep.subr.mxu0 %v561
    %894 = vmatpush1.msra.mxu0 %v560
    %895 = vmatprep.subr.mxu0 %v565
    %896 = vmatpush1.msra.mxu0 %v564
    %897 = vmatprep.subr.mxu0 %v569
    %898 = vmatpush1.msra.mxu0 %v568
    %899 = vmatprep.subr.mxu0 %v573
    %900 = vmatpush1.msra.mxu0 %v572
    %901 = vmatprep.subr.mxu0 %v577
    %902 = vmatpush1.msra.mxu0 %v576
    %903 = vmatprep.subr.mxu0 %v581
    %904 = vmatpush1.msra.mxu0 %v580
    %905 = vmatprep.subr.mxu0 %v585
    %906 = vmatpush1.msra.mxu0 %v584
    %907 = vmatprep.subr.mxu0 %v589
    %908 = vmatpush1.msra.mxu0 %v588
    %909 = vmatprep.subr.mxu0 %v593
    %910 = vmatpush1.msra.mxu0 %v592
    %911 = vmatprep.subr.mxu0 %v597
    %912 = vmatpush1.msra.mxu0 %v596
    %913 = vmatprep.subr.mxu0 %v601
    %914 = vmatpush1.msra.mxu0 %v600
    %915 = vmatprep.subr.mxu0 %v605
    %916 = vmatpush1.msra.mxu0 %v604
    %917 = vmatprep.subr.mxu0 %v609
    %918 = vmatpush1.msra.mxu0 %v608
    %919 = vmatprep.subr.mxu0 %v613
    %920 = vmatpush1.msra.mxu0 %v612
    %921 = vmatprep.subr.mxu0 %v617
    %922 = vmatpush1.msra.mxu0 %v616
    %923 = vmatprep.subr.mxu0 %v621
    %924 = vmatpush1.msra.mxu0 %v620
    %925 = vmatprep.subr.mxu0 %v625
    %926 = vmatpush1.msra.mxu0 %v624
    %927 = vmatprep.subr.mxu0 %v629
    %928 = vmatpush1.msra.mxu0 %v628
    %929 = vmatprep.mubr.f32.mxu0 %v372
    %930 = vmatmul.mubr.f32.gmra.mrb[0].mxu0 %v370
    %v931 = vpop.f32.mrb[0].mxu0
    %v932 = vadd.f32 %v861, %v931
    %v933 = vpop.f32.mrb[0].mxu0
    %v934 = vadd.f32 %v863, %v933
    %935 = vdwg.mxu0
    %v936 = vmax.f32 %v790, 0.0
    %v937 = vmax.f32 %v792, 0.0
    %v938 = vmax.f32 %v932, 0.0
    %v939 = vmax.f32 %v934, 0.0
    %v940 = vld [vmem:[#allocation8] sm:$0xff]
    %v941 = vld [vmem:[#allocation8 + $0x8] sm:$0xff]
    %v942 = vld [vmem:[#allocation8 + $0x10] sm:$0xff]
    %v943 = vld [vmem:[#allocation8 + $0x18] sm:$0xff]
    %v944 = vld [vmem:[#allocation8 + $0x20] sm:$0xff]
    %v945 = vld [vmem:[#allocation8 + $0x28] sm:$0xff]
    %v946 = vld [vmem:[#allocation8 + $0x30] sm:$0xff]
    %v947 = vld [vmem:[#allocation8 + $0x38] sm:$0xff]
    %v948 = vld [vmem:[#allocation8 + $0x40] sm:$0xff]
    %v949 = vld [vmem:[#allocation8 + $0x48] sm:$0xff]
    %v950 = vld [vmem:[#allocation8 + $0x50] sm:$0xff]
    %v951 = vld [vmem:[#allocation8 + $0x58] sm:$0xff]
    %v952 = vld [vmem:[#allocation8 + $0x60] sm:$0xff]
    %v953 = vld [vmem:[#allocation8 + $0x68] sm:$0xff]
    %v954 = vld [vmem:[#allocation8 + $0x70] sm:$0xff]
    %v955 = vld [vmem:[#allocation8 + $0x78] sm:$0xff]
    %v956 = vld [vmem:[#allocation8 + $0x80] sm:$0xff]
    %v957 = vld [vmem:[#allocation8 + $0x88] sm:$0xff]
    %v958 = vld [vmem:[#allocation8 + $0x90] sm:$0xff]
    %v959 = vld [vmem:[#allocation8 + $0x98] sm:$0xff]
    %v960 = vld [vmem:[#allocation8 + $0xa0] sm:$0xff]
    %v961 = vld [vmem:[#allocation8 + $0xa8] sm:$0xff]
    %v962 = vld [vmem:[#allocation8 + $0xb0] sm:$0xff]
    %v963 = vld [vmem:[#allocation8 + $0xb8] sm:$0xff]
    %v964 = vld [vmem:[#allocation8 + $0xc0] sm:$0xff]
    %v965 = vld [vmem:[#allocation8 + $0xc8] sm:$0xff]
    %v966 = vld [vmem:[#allocation8 + $0xd0] sm:$0xff]
    %v967 = vld [vmem:[#allocation8 + $0xd8] sm:$0xff]
    %v968 = vld [vmem:[#allocation8 + $0xe0] sm:$0xff]
    %v969 = vld [vmem:[#allocation8 + $0xe8] sm:$0xff]
    %v970 = vld [vmem:[#allocation8 + $0xf0] sm:$0xff]
    %v971 = vld [vmem:[#allocation8 + $0xf8] sm:$0xff]
    %v972 = vld [vmem:[#allocation8 + $0x100] sm:$0xff]
    %v973 = vld [vmem:[#allocation8 + $0x108] sm:$0xff]
    %v974 = vld [vmem:[#allocation8 + $0x110] sm:$0xff]
    %v975 = vld [vmem:[#allocation8 + $0x118] sm:$0xff]
    %v976 = vld [vmem:[#allocation8 + $0x120] sm:$0xff]
    %v977 = vld [vmem:[#allocation8 + $0x128] sm:$0xff]
    %v978 = vld [vmem:[#allocation8 + $0x130] sm:$0xff]
    %v979 = vld [vmem:[#allocation8 + $0x138] sm:$0xff]
    %v980 = vld [vmem:[#allocation8 + $0x140] sm:$0xff]
    %v981 = vld [vmem:[#allocation8 + $0x148] sm:$0xff]
    %v982 = vld [vmem:[#allocation8 + $0x150] sm:$0xff]
    %v983 = vld [vmem:[#allocation8 + $0x158] sm:$0xff]
    %v984 = vld [vmem:[#allocation8 + $0x160] sm:$0xff]
    %v985 = vld [vmem:[#allocation8 + $0x168] sm:$0xff]
    %v986 = vld [vmem:[#allocation8 + $0x170] sm:$0xff]
    %v987 = vld [vmem:[#allocation8 + $0x178] sm:$0xff]
    %v988 = vld [vmem:[#allocation8 + $0x180] sm:$0xff]
    %v989 = vld [vmem:[#allocation8 + $0x188] sm:$0xff]
    %v990 = vld [vmem:[#allocation8 + $0x190] sm:$0xff]
    %v991 = vld [vmem:[#allocation8 + $0x198] sm:$0xff]
    %v992 = vld [vmem:[#allocation8 + $0x1a0] sm:$0xff]
    %v993 = vld [vmem:[#allocation8 + $0x1a8] sm:$0xff]
    %v994 = vld [vmem:[#allocation8 + $0x1b0] sm:$0xff]
    %v995 = vld [vmem:[#allocation8 + $0x1b8] sm:$0xff]
    %v996 = vld [vmem:[#allocation8 + $0x1c0] sm:$0xff]
    %v997 = vld [vmem:[#allocation8 + $0x1c8] sm:$0xff]
    %v998 = vld [vmem:[#allocation8 + $0x1d0] sm:$0xff]
    %v999 = vld [vmem:[#allocation8 + $0x1d8] sm:$0xff]
    %v1000 = vld [vmem:[#allocation8 + $0x1e0] sm:$0xff]
    %v1001 = vld [vmem:[#allocation8 + $0x1e8] sm:$0xff]
    %v1002 = vld [vmem:[#allocation8 + $0x1f0] sm:$0xff]
    %v1003 = vld [vmem:[#allocation8 + $0x1f8] sm:$0xff]
    %v1004 = vld [vmem:[%s6] sm:$0x1]
    %v1006 = vlaneseq
    %v1007 = vshrl.u32 %v1006, 7
    %v1008 = vsub.s32 0, %v1007
    %v1009 = vrot.slane %v1004, %v1008
    %1011 = vmatprep.subr.mxu0 0.0
    %1012 = vmatpush1.msra.mxu0 %v940
    %1013 = vmatprep.subr.mxu0 0.0
    %1014 = vmatpush1.msra.mxu0 %v941
    %1015 = vmatprep.subr.mxu0 0.0
    %1016 = vmatpush1.msra.mxu0 %v942
    %1017 = vmatprep.subr.mxu0 0.0
    %1018 = vmatpush1.msra.mxu0 %v943
    %1019 = vmatprep.subr.mxu0 0.0
    %1020 = vmatpush1.msra.mxu0 %v944
    %1021 = vmatprep.subr.mxu0 0.0
    %1022 = vmatpush1.msra.mxu0 %v945
    %1023 = vmatprep.subr.mxu0 0.0
    %1024 = vmatpush1.msra.mxu0 %v946
    %1025 = vmatprep.subr.mxu0 0.0
    %1026 = vmatpush1.msra.mxu0 %v947
    %1027 = vmatprep.subr.mxu0 0.0
    %1028 = vmatpush1.msra.mxu0 %v948
    %1029 = vmatprep.subr.mxu0 0.0
    %1030 = vmatpush1.msra.mxu0 %v949
    %1031 = vmatprep.subr.mxu0 0.0
    %1032 = vmatpush1.msra.mxu0 %v950
    %1033 = vmatprep.subr.mxu0 0.0
    %1034 = vmatpush1.msra.mxu0 %v951
    %1035 = vmatprep.subr.mxu0 0.0
    %1036 = vmatpush1.msra.mxu0 %v952
    %1037 = vmatprep.subr.mxu0 0.0
    %1038 = vmatpush1.msra.mxu0 %v953
    %1039 = vmatprep.subr.mxu0 0.0
    %1040 = vmatpush1.msra.mxu0 %v954
    %1041 = vmatprep.subr.mxu0 0.0
    %1042 = vmatpush1.msra.mxu0 %v955
    %1043 = vmatprep.subr.mxu0 0.0
    %1044 = vmatpush1.msra.mxu0 %v956
    %1045 = vmatprep.subr.mxu0 0.0
    %1046 = vmatpush1.msra.mxu0 %v957
    %1047 = vmatprep.subr.mxu0 0.0
    %1048 = vmatpush1.msra.mxu0 %v958
    %1049 = vmatprep.subr.mxu0 0.0
    %1050 = vmatpush1.msra.mxu0 %v959
    %1051 = vmatprep.subr.mxu0 0.0
    %1052 = vmatpush1.msra.mxu0 %v960
    %1053 = vmatprep.subr.mxu0 0.0
    %1054 = vmatpush1.msra.mxu0 %v961
    %1055 = vmatprep.subr.mxu0 0.0
    %1056 = vmatpush1.msra.mxu0 %v962
    %1057 = vmatprep.subr.mxu0 0.0
    %1058 = vmatpush1.msra.mxu0 %v963
    %1059 = vmatprep.subr.mxu0 0.0
    %1060 = vmatpush1.msra.mxu0 %v964
    %1061 = vmatprep.subr.mxu0 0.0
    %1062 = vmatpush1.msra.mxu0 %v965
    %1063 = vmatprep.subr.mxu0 0.0
    %1064 = vmatpush1.msra.mxu0 %v966
    %1065 = vmatprep.subr.mxu0 0.0
    %1066 = vmatpush1.msra.mxu0 %v967
    %1067 = vmatprep.subr.mxu0 0.0
    %1068 = vmatpush1.msra.mxu0 %v968
    %1069 = vmatprep.subr.mxu0 0.0
    %1070 = vmatpush1.msra.mxu0 %v969
    %1071 = vmatprep.subr.mxu0 0.0
    %1072 = vmatpush1.msra.mxu0 %v970
    %1073 = vmatprep.subr.mxu0 0.0
    %1074 = vmatpush1.msra.mxu0 %v971
    %1075 = vmatprep.mubr.f32.mxu0 %v937
    %1076 = vmatmul.mubr.f32.gmra.mrb[0].mxu0 %v936
    %v1077 = vpop.f32.mrb[0].mxu0
    %v1078 = vadd.f32 %v1009, %v1077
    %v1079 = vpop.f32.mrb[0].mxu0
    %1080 = vdwg.mxu0
    %1081 = vmatprep.subr.mxu0 0.0
    %1082 = vmatpush1.msra.mxu0 %v972
    %1083 = vmatprep.subr.mxu0 0.0
    %1084 = vmatpush1.msra.mxu0 %v973
    %1085 = vmatprep.subr.mxu0 0.0
    %1086 = vmatpush1.msra.mxu0 %v974
    %1087 = vmatprep.subr.mxu0 0.0
    %1088 = vmatpush1.msra.mxu0 %v975
    %1089 = vmatprep.subr.mxu0 0.0
    %1090 = vmatpush1.msra.mxu0 %v976
    %1091 = vmatprep.subr.mxu0 0.0
    %1092 = vmatpush1.msra.mxu0 %v977
    %1093 = vmatprep.subr.mxu0 0.0
    %1094 = vmatpush1.msra.mxu0 %v978
    %1095 = vmatprep.subr.mxu0 0.0
    %1096 = vmatpush1.msra.mxu0 %v979
    %1097 = vmatprep.subr.mxu0 0.0
    %1098 = vmatpush1.msra.mxu0 %v980
    %1099 = vmatprep.subr.mxu0 0.0
    %1100 = vmatpush1.msra.mxu0 %v981
    %1101 = vmatprep.subr.mxu0 0.0
    %1102 = vmatpush1.msra.mxu0 %v982
    %1103 = vmatprep.subr.mxu0 0.0
    %1104 = vmatpush1.msra.mxu0 %v983
    %1105 = vmatprep.subr.mxu0 0.0
    %1106 = vmatpush1.msra.mxu0 %v984
    %1107 = vmatprep.subr.mxu0 0.0
    %1108 = vmatpush1.msra.mxu0 %v985
    %1109 = vmatprep.subr.mxu0 0.0
    %1110 = vmatpush1.msra.mxu0 %v986
    %1111 = vmatprep.subr.mxu0 0.0
    %1112 = vmatpush1.msra.mxu0 %v987
    %1113 = vmatprep.subr.mxu0 0.0
    %1114 = vmatpush1.msra.mxu0 %v988
    %1115 = vmatprep.subr.mxu0 0.0
    %1116 = vmatpush1.msra.mxu0 %v989
    %1117 = vmatprep.subr.mxu0 0.0
    %1118 = vmatpush1.msra.mxu0 %v990
    %1119 = vmatprep.subr.mxu0 0.0
    %1120 = vmatpush1.msra.mxu0 %v991
    %1121 = vmatprep.subr.mxu0 0.0
    %1122 = vmatpush1.msra.mxu0 %v992
    %1123 = vmatprep.subr.mxu0 0.0
    %1124 = vmatpush1.msra.mxu0 %v993
    %1125 = vmatprep.subr.mxu0 0.0
    %1126 = vmatpush1.msra.mxu0 %v994
    %1127 = vmatprep.subr.mxu0 0.0
    %1128 = vmatpush1.msra.mxu0 %v995
    %1129 = vmatprep.subr.mxu0 0.0
    %1130 = vmatpush1.msra.mxu0 %v996
    %1131 = vmatprep.subr.mxu0 0.0
    %1132 = vmatpush1.msra.mxu0 %v997
    %1133 = vmatprep.subr.mxu0 0.0
    %1134 = vmatpush1.msra.mxu0 %v998
    %1135 = vmatprep.subr.mxu0 0.0
    %1136 = vmatpush1.msra.mxu0 %v999
    %1137 = vmatprep.subr.mxu0 0.0
    %1138 = vmatpush1.msra.mxu0 %v1000
    %1139 = vmatprep.subr.mxu0 0.0
    %1140 = vmatpush1.msra.mxu0 %v1001
    %1141 = vmatprep.subr.mxu0 0.0
    %1142 = vmatpush1.msra.mxu0 %v1002
    %1143 = vmatprep.subr.mxu0 0.0
    %1144 = vmatpush1.msra.mxu0 %v1003
    %1145 = vmatprep.mubr.f32.mxu0 %v939
    %1146 = vmatmul.mubr.f32.gmra.mrb[0].mxu0 %v938
    %v1147 = vpop.f32.mrb[0].mxu0
    %v1148 = vadd.f32 %v1078, %v1147
    %v1149 = vpop.f32.mrb[0].mxu0
    %1150 = vdwg.mxu0
    %1151 = vst [vmem:[#allocation10] sm:$0xff] %v1148
    // Predicated region
    $region46: #{tpu_custom_call.1} parent=1 // pred_check
      _
    $region47: #{tpu_custom_call.1} parent=1 // pred_check_branch
      %1153 = sbr.rel (0) target = $region49
    $region48: #{tpu_custom_call.1} parent=1 // pred_region
      %s1155 = ssub.s32 128, 128
      %1156 = vsyncadd [#allocation4], %s1155
      %s1158 = sshll.u32 [#allocation10], 4
      %s1159 = int_to_ptr.vmem [resolvable:$true] %s1158
      %1161 = dma.vmem_to_hbm [thread:$0]  %s1159, 128, %s7, [#allocation4]
    $region49: #{tpu_custom_call.1} parent=1 // pred_fallthru
      _
    // Predicated region
    $region50: #{tpu_custom_call.1} parent=1 // pred_check
      _
    $region51: #{tpu_custom_call.1} parent=1 // pred_check_branch
      %1163 = sbr.rel (0) target = $region53
    $region52: #{tpu_custom_call.1} parent=1 // pred_region
      %1164 = dma.done [#allocation4], 128
    $region53: #{tpu_custom_call.1} parent=1 // pred_fallthru
      _
    %1165 = vsyncpa [#allocation3], 1
    %1166 = vsyncpa [#allocation6], 1
    %1167 = vsyncpa [#allocation9], 1
    %1168 = vsyncpa [#allocation4], 1

// kernel: tpu_custom_call.1
$region0: #{tpu_custom_call.1}
  #allocation0 [shape = 'u32[]', space=smem, size = 0x4, offset = 0x4, fixed_abs, tag = 'smem constant byte address 0x4 - core index']
  #allocation1 [shape = 'u32[144,128]{1,0:T(1,128)}', space=vmem, size = 0x12000, scoped, tag = 'internal scratch']
  %s0 = inlined_call_operand.hbm [shape: f32[8,256], index: 0, kind: input, shape index: {}]
  %s1 = inlined_call_operand.hbm [shape: f32[256,512], index: 1, kind: input, shape index: {}]
  %s2 = inlined_call_operand.vmem [shape: f32[1,512], index: 2, kind: input, shape index: {}]
  %s3 = inlined_call_operand.hbm [shape: f32[512,512], index: 3, kind: input, shape index: {}]
  %s4 = inlined_call_operand.vmem [shape: f32[1,512], index: 4, kind: input, shape index: {}]
  %s5 = inlined_call_operand.hbm [shape: f32[512,128], index: 5, kind: input, shape index: {}]
  %s6 = inlined_call_operand.vmem [shape: f32[1,128], index: 6, kind: input, shape index: {}]
  %s7 = inlined_call_operand.hbm [shape: f32[8,128], index: 7, kind: output, shape index: {}]
  %s8 = sld [smem:[#allocation0]]
  $region54: #{tpu_custom_call.1} parent=0
    _
  %s10 = ssub.s32 1, %s8
  %s11 = scalar_select 0, %s10, %s8
  $region1: #{tpu_custom_call.1} parent=0
    #allocation2 [shape = 'u8[8192]{0}', space=vmem, size = 0x2000, scoped, tag = 'input window, operand 0, single buffered']
    #allocation3 [shape = 's32[1]{0}', space=sflag, size = 0x4, scoped, tag = 'scoped memory for tpu_custom_call.1']
    #allocation4 [shape = 's32[1]{0}', space=sflag, size = 0x4, scoped, tag = 'scoped memory for tpu_custom_call.1']
    #allocation5 [shape = 'u8[524288]{0}', space=vmem, size = 0x80000, scoped, tag = 'input window, operand 1, single buffered']
    #allocation6 [shape = 's32[1]{0}', space=sflag, size = 0x4, scoped, tag = 'scoped memory for tpu_custom_call.1']
    #allocation7 [shape = 'u8[1048576]{0}', space=vmem, size = 0x100000, scoped, tag = 'input window, operand 3, single buffered']
    #allocation8 [shape = 'u8[262144]{0}', space=vmem, size = 0x40000, scoped, tag = 'input window, operand 5, single buffered']
    #allocation9 [shape = 's32[1]{0}', space=sflag, size = 0x4, scoped, tag = 'scoped memory for tpu_custom_call.1']
    #allocation10 [shape = 'u8[4096]{0}', space=vmem, size = 0x1000, scoped, tag = 'output window, operand 0, single buffered']
    %12 = vsyncpa [#allocation3], 0
    %13 = vsyncpa [#allocation6], 0
    %14 = vsyncpa [#allocation9], 0
    %15 = vsyncpa [#allocation4], 0
    // Predicated region
    $region2: #{tpu_custom_call.1} parent=1 // pred_check
      _
    $region3: #{tpu_custom_call.1} parent=1 // pred_check_branch
      %17 = sbr.rel (0) target = $region5
    $region4: #{tpu_custom_call.1} parent=1 // pred_region
      %s19 = ssub.s32 256, 256
      %20 = vsyncadd [#allocation3], %s19
      %s22 = sshll.u32 [#allocation2], 4
      %s23 = int_to_ptr.vmem [resolvable:$true] %s22
      %25 = dma.hbm_to_vmem [thread:$0]  %s0, 256, %s23, [#allocation3]
    $region5: #{tpu_custom_call.1} parent=1 // pred_fallthru
      _
    // Predicated region
    $region6: #{tpu_custom_call.1} parent=1 // pred_check
      _
    $region7: #{tpu_custom_call.1} parent=1 // pred_check_branch
      %27 = sbr.rel (0) target = $region9
    $region8: #{tpu_custom_call.1} parent=1 // pred_region
      %s29 = ssub.s32 16384, 16384
      %30 = vsyncadd [#allocation6], %s29
      %s31 = sshll.u32 [#allocation5], 4
      %s32 = int_to_ptr.vmem [resolvable:$true] %s31
      %37 = dma.hbm_to_vmem [thread:$0]  %s1, 16384, %s32, [#allocation6], 512, 512, 32
    $region9: #{tpu_custom_call.1} parent=1 // pred_fallthru
      _
    // Predicated region
    $region10: #{tpu_custom_call.1} parent=1 // pred_check
      _
    $region11: #{tpu_custom_call.1} parent=1 // pred_check_branch
      %39 = sbr.rel (0) target = $region13
    $region12: #{tpu_custom_call.1} parent=1 // pred_region
      _
    $region13: #{tpu_custom_call.1} parent=1 // pred_fallthru
      _
    // Predicated region
    $region14: #{tpu_custom_call.1} parent=1 // pred_check
      _
    $region15: #{tpu_custom_call.1} parent=1 // pred_check_branch
      %41 = sbr.rel (0) target = $region17
    $region16: #{tpu_custom_call.1} parent=1 // pred_region
      %s43 = ssub.s32 32768, 32768
      %44 = vsyncadd [#allocation6], %s43
      %s45 = sshll.u32 [#allocation7], 4
      %s46 = int_to_ptr.vmem [resolvable:$true] %s45
      %51 = dma.hbm_to_vmem [thread:$0]  %s3, 32768, %s46, [#allocation6], 512, 512, 32
    $region17: #{tpu_custom_call.1} parent=1 // pred_fallthru
      _
    // Predicated region
    $region18: #{tpu_custom_call.1} parent=1 // pred_check
      _
    $region19: #{tpu_custom_call.1} parent=1 // pred_check_branch
      %53 = sbr.rel (0) target = $region21
    $region20: #{tpu_custom_call.1} parent=1 // pred_region
      _
    $region21: #{tpu_custom_call.1} parent=1 // pred_fallthru
      _
    // Predicated region
    $region22: #{tpu_custom_call.1} parent=1 // pred_check
      _
    $region23: #{tpu_custom_call.1} parent=1 // pred_check_branch
      %55 = sbr.rel (0) target = $region25
    $region24: #{tpu_custom_call.1} parent=1 // pred_region
      %s57 = ssub.s32 8192, 8192
      %58 = vsyncadd [#allocation9], %s57
      %s59 = sshll.u32 [#allocation8], 4
      %s60 = int_to_ptr.vmem [resolvable:$true] %s59
      %65 = dma.hbm_to_vmem [thread:$0]  %s5, 8192, %s60, [#allocation9], 128, 128, 8
    $region25: #{tpu_custom_call.1} parent=1 // pred_fallthru
      _
    // Predicated region
    $region26: #{tpu_custom_call.1} parent=1 // pred_check
      _
    $region27: #{tpu_custom_call.1} parent=1 // pred_check_branch
      %67 = sbr.rel (0) target = $region29
    $region28: #{tpu_custom_call.1} parent=1 // pred_region
      _
    $region29: #{tpu_custom_call.1} parent=1 // pred_fallthru
      _
    // Predicated region
    $region30: #{tpu_custom_call.1} parent=1 // pred_check
      _
    $region31: #{tpu_custom_call.1} parent=1 // pred_check_branch
      %69 = sbr.rel (0) target = $region33
    $region32: #{tpu_custom_call.1} parent=1 // pred_region
      %70 = dma.done [#allocation3], 256
    $region33: #{tpu_custom_call.1} parent=1 // pred_fallthru
      _
    // Predicated region
    $region34: #{tpu_custom_call.1} parent=1 // pred_check
      _
    $region35: #{tpu_custom_call.1} parent=1 // pred_check_branch
      %72 = sbr.rel (0) target = $region37
    $region36: #{tpu_custom_call.1} parent=1 // pred_region
      %73 = dma.done [#allocation6], 16384
    $region37: #{tpu_custom_call.1} parent=1 // pred_fallthru
      _
    // Predicated region
    $region38: #{tpu_custom_call.1} parent=1 // pred_check
      _
    $region39: #{tpu_custom_call.1} parent=1 // pred_check_branch
      %75 = sbr.rel (0) target = $region41
    $region40: #{tpu_custom_call.1} parent=1 // pred_region
      %76 = dma.done [#allocation6], 32768
    $region41: #{tpu_custom_call.1} parent=1 // pred_fallthru
      _
    // Predicated region
    $region42: #{tpu_custom_call.1} parent=1 // pred_check
      _
    $region43: #{tpu_custom_call.1} parent=1 // pred_check_branch
      %78 = sbr.rel (0) target = $region45
    $region44: #{tpu_custom_call.1} parent=1 // pred_region
      %79 = dma.done [#allocation9], 8192
    $region45: #{tpu_custom_call.1} parent=1 // pred_fallthru
      _
    %v80 = vld [vmem:[#allocation5] sm:$0xff]
    %v81 = vld [vmem:[#allocation5 + $0x8] sm:$0xff]
    %v82 = vld [vmem:[#allocation5 + $0x10] sm:$0xff]
    %v83 = vld [vmem:[#allocation5 + $0x18] sm:$0xff]
    %v84 = vld [vmem:[#allocation5 + $0x20] sm:$0xff]
    %v85 = vld [vmem:[#allocation5 + $0x28] sm:$0xff]
    %v86 = vld [vmem:[#allocation5 + $0x30] sm:$0xff]
    %v87 = vld [vmem:[#allocation5 + $0x38] sm:$0xff]
    %v88 = vld [vmem:[#allocation5 + $0x40] sm:$0xff]
    %v89 = vld [vmem:[#allocation5 + $0x48] sm:$0xff]
    %v90 = vld [vmem:[#allocation5 + $0x50] sm:$0xff]
    %v91 = vld [vmem:[#allocation5 + $0x58] sm:$0xff]
    %v92 = vld [vmem:[#allocation5 + $0x60] sm:$0xff]
    %v93 = vld [vmem:[#allocation5 + $0x68] sm:$0xff]
    %v94 = vld [vmem:[#allocation5 + $0x70] sm:$0xff]
    %v95 = vld [vmem:[#allocation5 + $0x78] sm:$0xff]
    %v96 = vld [vmem:[#allocation5 + $0x80] sm:$0xff]
    %v97 = vld [vmem:[#allocation5 + $0x88] sm:$0xff]
    %v98 = vld [vmem:[#allocation5 + $0x90] sm:$0xff]
    %v99 = vld [vmem:[#allocation5 + $0x98] sm:$0xff]
    %v100 = vld [vmem:[#allocation5 + $0xa0] sm:$0xff]
    %v101 = vld [vmem:[#allocation5 + $0xa8] sm:$0xff]
    %v102 = vld [vmem:[#allocation5 + $0xb0] sm:$0xff]
    %v103 = vld [vmem:[#allocation5 + $0xb8] sm:$0xff]
    %v104 = vld [vmem:[#allocation5 + $0xc0] sm:$0xff]
    %v105 = vld [vmem:[#allocation5 + $0xc8] sm:$0xff]
    %v106 = vld [vmem:[#allocation5 + $0xd0] sm:$0xff]
    %v107 = vld [vmem:[#allocation5 + $0xd8] sm:$0xff]
    %v108 = vld [vmem:[#allocation5 + $0xe0] sm:$0xff]
    %v109 = vld [vmem:[#allocation5 + $0xe8] sm:$0xff]
    %v110 = vld [vmem:[#allocation5 + $0xf0] sm:$0xff]
    %v111 = vld [vmem:[#allocation5 + $0xf8] sm:$0xff]
    %v112 = vld [vmem:[#allocation5 + $0x100] sm:$0xff]
    %v113 = vld [vmem:[#allocation5 + $0x108] sm:$0xff]
    %v114 = vld [vmem:[#allocation5 + $0x110] sm:$0xff]
    %v115 = vld [vmem:[#allocation5 + $0x118] sm:$0xff]
    %v116 = vld [vmem:[#allocation5 + $0x120] sm:$0xff]
    %v117 = vld [vmem:[#allocation5 + $0x128] sm:$0xff]
    %v118 = vld [vmem:[#allocation5 + $0x130] sm:$0xff]
    %v119 = vld [vmem:[#allocation5 + $0x138] sm:$0xff]
    %v120 = vld [vmem:[#allocation5 + $0x140] sm:$0xff]
    %v121 = vld [vmem:[#allocation5 + $0x148] sm:$0xff]
    %v122 = vld [vmem:[#allocation5 + $0x150] sm:$0xff]
    %v123 = vld [vmem:[#allocation5 + $0x158] sm:$0xff]
    %v124 = vld [vmem:[#allocation5 + $0x160] sm:$0xff]
    %v125 = vld [vmem:[#allocation5 + $0x168] sm:$0xff]
    %v126 = vld [vmem:[#allocation5 + $0x170] sm:$0xff]
    %v127 = vld [vmem:[#allocation5 + $0x178] sm:$0xff]
    %v128 = vld [vmem:[#allocation5 + $0x180] sm:$0xff]
    %v129 = vld [vmem:[#allocation5 + $0x188] sm:$0xff]
    %v130 = vld [vmem:[#allocation5 + $0x190] sm:$0xff]
    %v131 = vld [vmem:[#allocation5 + $0x198] sm:$0xff]
    %v132 = vld [vmem:[#allocation5 + $0x1a0] sm:$0xff]
    %v133 = vld [vmem:[#allocation5 + $0x1a8] sm:$0xff]
    %v134 = vld [vmem:[#allocation5 + $0x1b0] sm:$0xff]
    %v135 = vld [vmem:[#allocation5 + $0x1b8] sm:$0xff]
    %v136 = vld [vmem:[#allocation5 + $0x1c0] sm:$0xff]
    %v137 = vld [vmem:[#allocation5 + $0x1c8] sm:$0xff]
    %v138 = vld [vmem:[#allocation5 + $0x1d0] sm:$0xff]
    %v139 = vld [vmem:[#allocation5 + $0x1d8] sm:$0xff]
    %v140 = vld [vmem:[#allocation5 + $0x1e0] sm:$0xff]
    %v141 = vld [vmem:[#allocation5 + $0x1e8] sm:$0xff]
    %v142 = vld [vmem:[#allocation5 + $0x1f0] sm:$0xff]
    %v143 = vld [vmem:[#allocation5 + $0x1f8] sm:$0xff]
    %v144 = vld [vmem:[#allocation5 + $0x200] sm:$0xff]
    %v145 = vld [vmem:[#allocation5 + $0x208] sm:$0xff]
    %v146 = vld [vmem:[#allocation5 + $0x210] sm:$0xff]
    %v147 = vld [vmem:[#allocation5 + $0x218] sm:$0xff]
    %v148 = vld [vmem:[#allocation5 + $0x220] sm:$0xff]
    %v149 = vld [vmem:[#allocation5 + $0x228] sm:$0xff]
    %v150 = vld [vmem:[#allocation5 + $0x230] sm:$0xff]
    %v151 = vld [vmem:[#allocation5 + $0x238] sm:$0xff]
    %v152 = vld [vmem:[#allocation5 + $0x240] sm:$0xff]
    %v153 = vld [vmem:[#allocation5 + $0x248] sm:$0xff]
    %v154 = vld [vmem:[#allocation5 + $0x250] sm:$0xff]
    %v155 = vld [vmem:[#allocation5 + $0x258] sm:$0xff]
    %v156 = vld [vmem:[#allocation5 + $0x260] sm:$0xff]
    %v157 = vld [vmem:[#allocation5 + $0x268] sm:$0xff]
    %v158 = vld [vmem:[#allocation5 + $0x270] sm:$0xff]
    %v159 = vld [vmem:[#allocation5 + $0x278] sm:$0xff]
    %v160 = vld [vmem:[#allocation5 + $0x280] sm:$0xff]
    %v161 = vld [vmem:[#allocation5 + $0x288] sm:$0xff]
    %v162 = vld [vmem:[#allocation5 + $0x290] sm:$0xff]
    %v163 = vld [vmem:[#allocation5 + $0x298] sm:$0xff]
    %v164 = vld [vmem:[#allocation5 + $0x2a0] sm:$0xff]
    %v165 = vld [vmem:[#allocation5 + $0x2a8] sm:$0xff]
    %v166 = vld [vmem:[#allocation5 + $0x2b0] sm:$0xff]
    %v167 = vld [vmem:[#allocation5 + $0x2b8] sm:$0xff]
    %v168 = vld [vmem:[#allocation5 + $0x2c0] sm:$0xff]
    %v169 = vld [vmem:[#allocation5 + $0x2c8] sm:$0xff]
    %v170 = vld [vmem:[#allocation5 + $0x2d0] sm:$0xff]
    %v171 = vld [vmem:[#allocation5 + $0x2d8] sm:$0xff]
    %v172 = vld [vmem:[#allocation5 + $0x2e0] sm:$0xff]
    %v173 = vld [vmem:[#allocation5 + $0x2e8] sm:$0xff]
    %v174 = vld [vmem:[#allocation5 + $0x2f0] sm:$0xff]
    %v175 = vld [vmem:[#allocation5 + $0x2f8] sm:$0xff]
    %v176 = vld [vmem:[#allocation5 + $0x300] sm:$0xff]
    %v177 = vld [vmem:[#allocation5 + $0x308] sm:$0xff]
    %v178 = vld [vmem:[#allocation5 + $0x310] sm:$0xff]
    %v179 = vld [vmem:[#allocation5 + $0x318] sm:$0xff]
    %v180 = vld [vmem:[#allocation5 + $0x320] sm:$0xff]
    %v181 = vld [vmem:[#allocation5 + $0x328] sm:$0xff]
    %v182 = vld [vmem:[#allocation5 + $0x330] sm:$0xff]
    %v183 = vld [vmem:[#allocation5 + $0x338] sm:$0xff]
    %v184 = vld [vmem:[#allocation5 + $0x340] sm:$0xff]
    %v185 = vld [vmem:[#allocation5 + $0x348] sm:$0xff]
    %v186 = vld [vmem:[#allocation5 + $0x350] sm:$0xff]
    %v187 = vld [vmem:[#allocation5 + $0x358] sm:$0xff]
    %v188 = vld [vmem:[#allocation5 + $0x360] sm:$0xff]
    %v189 = vld [vmem:[#allocation5 + $0x368] sm:$0xff]
    %v190 = vld [vmem:[#allocation5 + $0x370] sm:$0xff]
    %v191 = vld [vmem:[#allocation5 + $0x378] sm:$0xff]
    %v192 = vld [vmem:[#allocation5 + $0x380] sm:$0xff]
    %v193 = vld [vmem:[#allocation5 + $0x388] sm:$0xff]
    %v194 = vld [vmem:[#allocation5 + $0x390] sm:$0xff]
    %v195 = vld [vmem:[#allocation5 + $0x398] sm:$0xff]
    %v196 = vld [vmem:[#allocation5 + $0x3a0] sm:$0xff]
    %v197 = vld [vmem:[#allocation5 + $0x3a8] sm:$0xff]
    %v198 = vld [vmem:[#allocation5 + $0x3b0] sm:$0xff]
    %v199 = vld [vmem:[#allocation5 + $0x3b8] sm:$0xff]
    %v200 = vld [vmem:[#allocation5 + $0x3c0] sm:$0xff]
    %v201 = vld [vmem:[#allocation5 + $0x3c8] sm:$0xff]
    %v202 = vld [vmem:[#allocation5 + $0x3d0] sm:$0xff]
    %v203 = vld [vmem:[#allocation5 + $0x3d8] sm:$0xff]
    %v204 = vld [vmem:[#allocation5 + $0x3e0] sm:$0xff]
    %v205 = vld [vmem:[#allocation5 + $0x3e8] sm:$0xff]
    %v206 = vld [vmem:[#allocation5 + $0x3f0] sm:$0xff]
    %v207 = vld [vmem:[#allocation5 + $0x3f8] sm:$0xff]
    %v208 = vld [vmem:[#allocation2] sm:$0xff]
    %v209 = vld [vmem:[#allocation2 + $0x8] sm:$0xff]
    %v210 = vld [vmem:[%s2] sm:$0xf]
    %v212 = vlaneseq
    %v213 = vshrl.u32 %v212, 7
    %v214 = vsub.s32 0, %v213
    %v215 = vrot.slane %v210, %v214
    %v216 = vlaneseq
    %v217 = vshrl.u32 %v216, 7
    %v218 = vsub.s32 1, %v217
    %v219 = vrot.slane %v210, %v218
    %v220 = vlaneseq
    %v221 = vshrl.u32 %v220, 7
    %v222 = vsub.s32 2, %v221
    %v223 = vrot.slane %v210, %v222
    %v224 = vlaneseq
    %v225 = vshrl.u32 %v224, 7
    %v226 = vsub.s32 3, %v225
    %v227 = vrot.slane %v210, %v226
    %232 = vmatprep.subr.mxu0 %v81
    %233 = vmatpush1.msra.mxu0 %v80
    %234 = vmatprep.subr.mxu0 %v85
    %235 = vmatpush1.msra.mxu0 %v84
    %236 = vmatprep.subr.mxu0 %v89
    %237 = vmatpush1.msra.mxu0 %v88
    %238 = vmatprep.subr.mxu0 %v93
    %239 = vmatpush1.msra.mxu0 %v92
    %240 = vmatprep.subr.mxu0 %v97
    %241 = vmatpush1.msra.mxu0 %v96
    %242 = vmatprep.subr.mxu0 %v101
    %243 = vmatpush1.msra.mxu0 %v100
    %244 = vmatprep.subr.mxu0 %v105
    %245 = vmatpush1.msra.mxu0 %v104
    %246 = vmatprep.subr.mxu0 %v109
    %247 = vmatpush1.msra.mxu0 %v108
    %248 = vmatprep.subr.mxu0 %v113
    %249 = vmatpush1.msra.mxu0 %v112
    %250 = vmatprep.subr.mxu0 %v117
    %251 = vmatpush1.msra.mxu0 %v116
    %252 = vmatprep.subr.mxu0 %v121
    %253 = vmatpush1.msra.mxu0 %v120
    %254 = vmatprep.subr.mxu0 %v125
    %255 = vmatpush1.msra.mxu0 %v124
    %256 = vmatprep.subr.mxu0 %v129
    %257 = vmatpush1.msra.mxu0 %v128
    %258 = vmatprep.subr.mxu0 %v133
    %259 = vmatpush1.msra.mxu0 %v132
    %260 = vmatprep.subr.mxu0 %v137
    %261 = vmatpush1.msra.mxu0 %v136
    %262 = vmatprep.subr.mxu0 %v141
    %263 = vmatpush1.msra.mxu0 %v140
    %264 = vmatprep.subr.mxu0 %v145
    %265 = vmatpush1.msra.mxu0 %v144
    %266 = vmatprep.subr.mxu0 %v149
    %267 = vmatpush1.msra.mxu0 %v148
    %268 = vmatprep.subr.mxu0 %v153
    %269 = vmatpush1.msra.mxu0 %v152
    %270 = vmatprep.subr.mxu0 %v157
    %271 = vmatpush1.msra.mxu0 %v156
    %272 = vmatprep.subr.mxu0 %v161
    %273 = vmatpush1.msra.mxu0 %v160
    %274 = vmatprep.subr.mxu0 %v165
    %275 = vmatpush1.msra.mxu0 %v164
    %276 = vmatprep.subr.mxu0 %v169
    %277 = vmatpush1.msra.mxu0 %v168
    %278 = vmatprep.subr.mxu0 %v173
    %279 = vmatpush1.msra.mxu0 %v172
    %280 = vmatprep.subr.mxu0 %v177
    %281 = vmatpush1.msra.mxu0 %v176
    %282 = vmatprep.subr.mxu0 %v181
    %283 = vmatpush1.msra.mxu0 %v180
    %284 = vmatprep.subr.mxu0 %v185
    %285 = vmatpush1.msra.mxu0 %v184
    %286 = vmatprep.subr.mxu0 %v189
    %287 = vmatpush1.msra.mxu0 %v188
    %288 = vmatprep.subr.mxu0 %v193
    %289 = vmatpush1.msra.mxu0 %v192
    %290 = vmatprep.subr.mxu0 %v197
    %291 = vmatpush1.msra.mxu0 %v196
    %292 = vmatprep.subr.mxu0 %v201
    %293 = vmatpush1.msra.mxu0 %v200
    %294 = vmatprep.subr.mxu0 %v205
    %295 = vmatpush1.msra.mxu0 %v204
    %296 = vmatprep.mubr.f32.mxu0 %v209
    %297 = vmatmul.mubr.f32.gmra.mrb[0].mxu0 %v208
    %v298 = vpop.f32.mrb[0].mxu0
    %v299 = vadd.f32 %v215, %v298
    %v300 = vpop.f32.mrb[0].mxu0
    %v301 = vadd.f32 %v219, %v300
    %302 = vdwg.mxu0
    %303 = vmatprep.subr.mxu0 %v83
    %304 = vmatpush1.msra.mxu0 %v82
    %305 = vmatprep.subr.mxu0 %v87
    %306 = vmatpush1.msra.mxu0 %v86
    %307 = vmatprep.subr.mxu0 %v91
    %308 = vmatpush1.msra.mxu0 %v90
    %309 = vmatprep.subr.mxu0 %v95
    %310 = vmatpush1.msra.mxu0 %v94
    %311 = vmatprep.subr.mxu0 %v99
    %312 = vmatpush1.msra.mxu0 %v98
    %313 = vmatprep.subr.mxu0 %v103
    %314 = vmatpush1.msra.mxu0 %v102
    %315 = vmatprep.subr.mxu0 %v107
    %316 = vmatpush1.msra.mxu0 %v106
    %317 = vmatprep.subr.mxu0 %v111
    %318 = vmatpush1.msra.mxu0 %v110
    %319 = vmatprep.subr.mxu0 %v115
    %320 = vmatpush1.msra.mxu0 %v114
    %321 = vmatprep.subr.mxu0 %v119
    %322 = vmatpush1.msra.mxu0 %v118
    %323 = vmatprep.subr.mxu0 %v123
    %324 = vmatpush1.msra.mxu0 %v122
    %325 = vmatprep.subr.mxu0 %v127
    %326 = vmatpush1.msra.mxu0 %v126
    %327 = vmatprep.subr.mxu0 %v131
    %328 = vmatpush1.msra.mxu0 %v130
    %329 = vmatprep.subr.mxu0 %v135
    %330 = vmatpush1.msra.mxu0 %v134
    %331 = vmatprep.subr.mxu0 %v139
    %332 = vmatpush1.msra.mxu0 %v138
    %333 = vmatprep.subr.mxu0 %v143
    %334 = vmatpush1.msra.mxu0 %v142
    %335 = vmatprep.subr.mxu0 %v147
    %336 = vmatpush1.msra.mxu0 %v146
    %337 = vmatprep.subr.mxu0 %v151
    %338 = vmatpush1.msra.mxu0 %v150
    %339 = vmatprep.subr.mxu0 %v155
    %340 = vmatpush1.msra.mxu0 %v154
    %341 = vmatprep.subr.mxu0 %v159
    %342 = vmatpush1.msra.mxu0 %v158
    %343 = vmatprep.subr.mxu0 %v163
    %344 = vmatpush1.msra.mxu0 %v162
    %345 = vmatprep.subr.mxu0 %v167
    %346 = vmatpush1.msra.mxu0 %v166
    %347 = vmatprep.subr.mxu0 %v171
    %348 = vmatpush1.msra.mxu0 %v170
    %349 = vmatprep.subr.mxu0 %v175
    %350 = vmatpush1.msra.mxu0 %v174
    %351 = vmatprep.subr.mxu0 %v179
    %352 = vmatpush1.msra.mxu0 %v178
    %353 = vmatprep.subr.mxu0 %v183
    %354 = vmatpush1.msra.mxu0 %v182
    %355 = vmatprep.subr.mxu0 %v187
    %356 = vmatpush1.msra.mxu0 %v186
    %357 = vmatprep.subr.mxu0 %v191
    %358 = vmatpush1.msra.mxu0 %v190
    %359 = vmatprep.subr.mxu0 %v195
    %360 = vmatpush1.msra.mxu0 %v194
    %361 = vmatprep.subr.mxu0 %v199
    %362 = vmatpush1.msra.mxu0 %v198
    %363 = vmatprep.subr.mxu0 %v203
    %364 = vmatpush1.msra.mxu0 %v202
    %365 = vmatprep.subr.mxu0 %v207
    %366 = vmatpush1.msra.mxu0 %v206
    %367 = vmatprep.mubr.f32.mxu0 %v209
    %368 = vmatmul.mubr.f32.gmra.mrb[0].mxu0 %v208
    %v369 = vpop.f32.mrb[0].mxu0
    %v370 = vadd.f32 %v223, %v369
    %v371 = vpop.f32.mrb[0].mxu0
    %v372 = vadd.f32 %v227, %v371
    %373 = vdwg.mxu0
    %v374 = vld [vmem:[#allocation7] sm:$0xff]
    %v375 = vld [vmem:[#allocation7 + $0x8] sm:$0xff]
    %v376 = vld [vmem:[#allocation7 + $0x10] sm:$0xff]
    %v377 = vld [vmem:[#allocation7 + $0x18] sm:$0xff]
    %v378 = vld [vmem:[#allocation7 + $0x20] sm:$0xff]
    %v379 = vld [vmem:[#allocation7 + $0x28] sm:$0xff]
    %v380 = vld [vmem:[#allocation7 + $0x30] sm:$0xff]
    %v381 = vld [vmem:[#allocation7 + $0x38] sm:$0xff]
    %v382 = vld [vmem:[#allocation7 + $0x40] sm:$0xff]
    %v383 = vld [vmem:[#allocation7 + $0x48] sm:$0xff]
    %v384 = vld [vmem:[#allocation7 + $0x50] sm:$0xff]
    %v385 = vld [vmem:[#allocation7 + $0x58] sm:$0xff]
    %v386 = vld [vmem:[#allocation7 + $0x60] sm:$0xff]
    %v387 = vld [vmem:[#allocation7 + $0x68] sm:$0xff]
    %v388 = vld [vmem:[#allocation7 + $0x70] sm:$0xff]
    %v389 = vld [vmem:[#allocation7 + $0x78] sm:$0xff]
    %v390 = vld [vmem:[#allocation7 + $0x80] sm:$0xff]
    %v391 = vld [vmem:[#allocation7 + $0x88] sm:$0xff]
    %v392 = vld [vmem:[#allocation7 + $0x90] sm:$0xff]
    %v393 = vld [vmem:[#allocation7 + $0x98] sm:$0xff]
    %v394 = vld [vmem:[#allocation7 + $0xa0] sm:$0xff]
    %v395 = vld [vmem:[#allocation7 + $0xa8] sm:$0xff]
    %v396 = vld [vmem:[#allocation7 + $0xb0] sm:$0xff]
    %v397 = vld [vmem:[#allocation7 + $0xb8] sm:$0xff]
    %v398 = vld [vmem:[#allocation7 + $0xc0] sm:$0xff]
    %v399 = vld [vmem:[#allocation7 + $0xc8] sm:$0xff]
    %v400 = vld [vmem:[#allocation7 + $0xd0] sm:$0xff]
    %v401 = vld [vmem:[#allocation7 + $0xd8] sm:$0xff]
    %v402 = vld [vmem:[#allocation7 + $0xe0] sm:$0xff]
    %v403 = vld [vmem:[#allocation7 + $0xe8] sm:$0xff]
    %v404 = vld [vmem:[#allocation7 + $0xf0] sm:$0xff]
    %v405 = vld [vmem:[#allocation7 + $0xf8] sm:$0xff]
    %v406 = vld [vmem:[#allocation7 + $0x100] sm:$0xff]
    %v407 = vld [vmem:[#allocation7 + $0x108] sm:$0xff]
    %v408 = vld [vmem:[#allocation7 + $0x110] sm:$0xff]
    %v409 = vld [vmem:[#allocation7 + $0x118] sm:$0xff]
    %v410 = vld [vmem:[#allocation7 + $0x120] sm:$0xff]
    %v411 = vld [vmem:[#allocation7 + $0x128] sm:$0xff]
    %v412 = vld [vmem:[#allocation7 + $0x130] sm:$0xff]
    %v413 = vld [vmem:[#allocation7 + $0x138] sm:$0xff]
    %v414 = vld [vmem:[#allocation7 + $0x140] sm:$0xff]
    %v415 = vld [vmem:[#allocation7 + $0x148] sm:$0xff]
    %v416 = vld [vmem:[#allocation7 + $0x150] sm:$0xff]
    %v417 = vld [vmem:[#allocation7 + $0x158] sm:$0xff]
    %v418 = vld [vmem:[#allocation7 + $0x160] sm:$0xff]
    %v419 = vld [vmem:[#allocation7 + $0x168] sm:$0xff]
    %v420 = vld [vmem:[#allocation7 + $0x170] sm:$0xff]
    %v421 = vld [vmem:[#allocation7 + $0x178] sm:$0xff]
    %v422 = vld [vmem:[#allocation7 + $0x180] sm:$0xff]
    %v423 = vld [vmem:[#allocation7 + $0x188] sm:$0xff]
    %v424 = vld [vmem:[#allocation7 + $0x190] sm:$0xff]
    %v425 = vld [vmem:[#allocation7 + $0x198] sm:$0xff]
    %v426 = vld [vmem:[#allocation7 + $0x1a0] sm:$0xff]
    %v427 = vld [vmem:[#allocation7 + $0x1a8] sm:$0xff]
    %v428 = vld [vmem:[#allocation7 + $0x1b0] sm:$0xff]
    %v429 = vld [vmem:[#allocation7 + $0x1b8] sm:$0xff]
    %v430 = vld [vmem:[#allocation7 + $0x1c0] sm:$0xff]
    %v431 = vld [vmem:[#allocation7 + $0x1c8] sm:$0xff]
    %v432 = vld [vmem:[#allocation7 + $0x1d0] sm:$0xff]
    %v433 = vld [vmem:[#allocation7 + $0x1d8] sm:$0xff]
    %v434 = vld [vmem:[#allocation7 + $0x1e0] sm:$0xff]
    %v435 = vld [vmem:[#allocation7 + $0x1e8] sm:$0xff]
    %v436 = vld [vmem:[#allocation7 + $0x1f0] sm:$0xff]
    %v437 = vld [vmem:[#allocation7 + $0x1f8] sm:$0xff]
    %v438 = vld [vmem:[#allocation7 + $0x200] sm:$0xff]
    %v439 = vld [vmem:[#allocation7 + $0x208] sm:$0xff]
    %v440 = vld [vmem:[#allocation7 + $0x210] sm:$0xff]
    %v441 = vld [vmem:[#allocation7 + $0x218] sm:$0xff]
    %v442 = vld [vmem:[#allocation7 + $0x220] sm:$0xff]
    %v443 = vld [vmem:[#allocation7 + $0x228] sm:$0xff]
    %v444 = vld [vmem:[#allocation7 + $0x230] sm:$0xff]
    %v445 = vld [vmem:[#allocation7 + $0x238] sm:$0xff]
    %v446 = vld [vmem:[#allocation7 + $0x240] sm:$0xff]
    %v447 = vld [vmem:[#allocation7 + $0x248] sm:$0xff]
    %v448 = vld [vmem:[#allocation7 + $0x250] sm:$0xff]
    %v449 = vld [vmem:[#allocation7 + $0x258] sm:$0xff]
    %v450 = vld [vmem:[#allocation7 + $0x260] sm:$0xff]
    %v451 = vld [vmem:[#allocation7 + $0x268] sm:$0xff]
    %v452 = vld [vmem:[#allocation7 + $0x270] sm:$0xff]
    %v453 = vld [vmem:[#allocation7 + $0x278] sm:$0xff]
    %v454 = vld [vmem:[#allocation7 + $0x280] sm:$0xff]
    %v455 = vld [vmem:[#allocation7 + $0x288] sm:$0xff]
    %v456 = vld [vmem:[#allocation7 + $0x290] sm:$0xff]
    %v457 = vld [vmem:[#allocation7 + $0x298] sm:$0xff]
    %v458 = vld [vmem:[#allocation7 + $0x2a0] sm:$0xff]
    %v459 = vld [vmem:[#allocation7 + $0x2a8] sm:$0xff]
    %v460 = vld [vmem:[#allocation7 + $0x2b0] sm:$0xff]
    %v461 = vld [vmem:[#allocation7 + $0x2b8] sm:$0xff]
    %v462 = vld [vmem:[#allocation7 + $0x2c0] sm:$0xff]
    %v463 = vld [vmem:[#allocation7 + $0x2c8] sm:$0xff]
    %v464 = vld [vmem:[#allocation7 + $0x2d0] sm:$0xff]
    %v465 = vld [vmem:[#allocation7 + $0x2d8] sm:$0xff]
    %v466 = vld [vmem:[#allocation7 + $0x2e0] sm:$0xff]
    %v467 = vld [vmem:[#allocation7 + $0x2e8] sm:$0xff]
    %v468 = vld [vmem:[#allocation7 + $0x2f0] sm:$0xff]
    %v469 = vld [vmem:[#allocation7 + $0x2f8] sm:$0xff]
    %v470 = vld [vmem:[#allocation7 + $0x300] sm:$0xff]
    %v471 = vld [vmem:[#allocation7 + $0x308] sm:$0xff]
    %v472 = vld [vmem:[#allocation7 + $0x310] sm:$0xff]
    %v473 = vld [vmem:[#allocation7 + $0x318] sm:$0xff]
    %v474 = vld [vmem:[#allocation7 + $0x320] sm:$0xff]
    %v475 = vld [vmem:[#allocation7 + $0x328] sm:$0xff]
    %v476 = vld [vmem:[#allocation7 + $0x330] sm:$0xff]
    %v477 = vld [vmem:[#allocation7 + $0x338] sm:$0xff]
    %v478 = vld [vmem:[#allocation7 + $0x340] sm:$0xff]
    %v479 = vld [vmem:[#allocation7 + $0x348] sm:$0xff]
    %v480 = vld [vmem:[#allocation7 + $0x350] sm:$0xff]
    %v481 = vld [vmem:[#allocation7 + $0x358] sm:$0xff]
    %v482 = vld [vmem:[#allocation7 + $0x360] sm:$0xff]
    %v483 = vld [vmem:[#allocation7 + $0x368] sm:$0xff]
    %v484 = vld [vmem:[#allocation7 + $0x370] sm:$0xff]
    %v485 = vld [vmem:[#allocation7 + $0x378] sm:$0xff]
    %v486 = vld [vmem:[#allocation7 + $0x380] sm:$0xff]
    %v487 = vld [vmem:[#allocation7 + $0x388] sm:$0xff]
    %v488 = vld [vmem:[#allocation7 + $0x390] sm:$0xff]
    %v489 = vld [vmem:[#allocation7 + $0x398] sm:$0xff]
    %v490 = vld [vmem:[#allocation7 + $0x3a0] sm:$0xff]
    %v491 = vld [vmem:[#allocation7 + $0x3a8] sm:$0xff]
    %v492 = vld [vmem:[#allocation7 + $0x3b0] sm:$0xff]
    %v493 = vld [vmem:[#allocation7 + $0x3b8] sm:$0xff]
    %v494 = vld [vmem:[#allocation7 + $0x3c0] sm:$0xff]
    %v495 = vld [vmem:[#allocation7 + $0x3c8] sm:$0xff]
    %v496 = vld [vmem:[#allocation7 + $0x3d0] sm:$0xff]
    %v497 = vld [vmem:[#allocation7 + $0x3d8] sm:$0xff]
    %v498 = vld [vmem:[#allocation7 + $0x3e0] sm:$0xff]
    %v499 = vld [vmem:[#allocation7 + $0x3e8] sm:$0xff]
    %v500 = vld [vmem:[#allocation7 + $0x3f0] sm:$0xff]
    %v501 = vld [vmem:[#allocation7 + $0x3f8] sm:$0xff]
    %v502 = vld [vmem:[#allocation7 + $0x400] sm:$0xff]
    %v503 = vld [vmem:[#allocation7 + $0x408] sm:$0xff]
    %v504 = vld [vmem:[#allocation7 + $0x410] sm:$0xff]
    %v505 = vld [vmem:[#allocation7 + $0x418] sm:$0xff]
    %v506 = vld [vmem:[#allocation7 + $0x420] sm:$0xff]
    %v507 = vld [vmem:[#allocation7 + $0x428] sm:$0xff]
    %v508 = vld [vmem:[#allocation7 + $0x430] sm:$0xff]
    %v509 = vld [vmem:[#allocation7 + $0x438] sm:$0xff]
    %v510 = vld [vmem:[#allocation7 + $0x440] sm:$0xff]
    %v511 = vld [vmem:[#allocation7 + $0x448] sm:$0xff]
    %v512 = vld [vmem:[#allocation7 + $0x450] sm:$0xff]
    %v513 = vld [vmem:[#allocation7 + $0x458] sm:$0xff]
    %v514 = vld [vmem:[#allocation7 + $0x460] sm:$0xff]
    %v515 = vld [vmem:[#allocation7 + $0x468] sm:$0xff]
    %v516 = vld [vmem:[#allocation7 + $0x470] sm:$0xff]
    %v517 = vld [vmem:[#allocation7 + $0x478] sm:$0xff]
    %v518 = vld [vmem:[#allocation7 + $0x480] sm:$0xff]
    %v519 = vld [vmem:[#allocation7 + $0x488] sm:$0xff]
    %v520 = vld [vmem:[#allocation7 + $0x490] sm:$0xff]
    %v521 = vld [vmem:[#allocation7 + $0x498] sm:$0xff]
    %v522 = vld [vmem:[#allocation7 + $0x4a0] sm:$0xff]
    %v523 = vld [vmem:[#allocation7 + $0x4a8] sm:$0xff]
    %v524 = vld [vmem:[#allocation7 + $0x4b0] sm:$0xff]
    %v525 = vld [vmem:[#allocation7 + $0x4b8] sm:$0xff]
    %v526 = vld [vmem:[#allocation7 + $0x4c0] sm:$0xff]
    %v527 = vld [vmem:[#allocation7 + $0x4c8] sm:$0xff]
    %v528 = vld [vmem:[#allocation7 + $0x4d0] sm:$0xff]
    %v529 = vld [vmem:[#allocation7 + $0x4d8] sm:$0xff]
    %v530 = vld [vmem:[#allocation7 + $0x4e0] sm:$0xff]
    %v531 = vld [vmem:[#allocation7 + $0x4e8] sm:$0xff]
    %v532 = vld [vmem:[#allocation7 + $0x4f0] sm:$0xff]
    %v533 = vld [vmem:[#allocation7 + $0x4f8] sm:$0xff]
    %v534 = vld [vmem:[#allocation7 + $0x500] sm:$0xff]
    %v535 = vld [vmem:[#allocation7 + $0x508] sm:$0xff]
    %v536 = vld [vmem:[#allocation7 + $0x510] sm:$0xff]
    %v537 = vld [vmem:[#allocation7 + $0x518] sm:$0xff]
    %v538 = vld [vmem:[#allocation7 + $0x520] sm:$0xff]
    %v539 = vld [vmem:[#allocation7 + $0x528] sm:$0xff]
    %v540 = vld [vmem:[#allocation7 + $0x530] sm:$0xff]
    %v541 = vld [vmem:[#allocation7 + $0x538] sm:$0xff]
    %v542 = vld [vmem:[#allocation7 + $0x540] sm:$0xff]
    %v543 = vld [vmem:[#allocation7 + $0x548] sm:$0xff]
    %v544 = vld [vmem:[#allocation7 + $0x550] sm:$0xff]
    %v545 = vld [vmem:[#allocation7 + $0x558] sm:$0xff]
    %v546 = vld [vmem:[#allocation7 + $0x560] sm:$0xff]
    %v547 = vld [vmem:[#allocation7 + $0x568] sm:$0xff]
    %v548 = vld [vmem:[#allocation7 + $0x570] sm:$0xff]
    %v549 = vld [vmem:[#allocation7 + $0x578] sm:$0xff]
    %v550 = vld [vmem:[#allocation7 + $0x580] sm:$0xff]
    %v551 = vld [vmem:[#allocation7 + $0x588] sm:$0xff]
    %v552 = vld [vmem:[#allocation7 + $0x590] sm:$0xff]
    %v553 = vld [vmem:[#allocation7 + $0x598] sm:$0xff]
    %v554 = vld [vmem:[#allocation7 + $0x5a0] sm:$0xff]
    %v555 = vld [vmem:[#allocation7 + $0x5a8] sm:$0xff]
    %v556 = vld [vmem:[#allocation7 + $0x5b0] sm:$0xff]
    %v557 = vld [vmem:[#allocation7 + $0x5b8] sm:$0xff]
    %v558 = vld [vmem:[#allocation7 + $0x5c0] sm:$0xff]
    %v559 = vld [vmem:[#allocation7 + $0x5c8] sm:$0xff]
    %v560 = vld [vmem:[#allocation7 + $0x5d0] sm:$0xff]
    %v561 = vld [vmem:[#allocation7 + $0x5d8] sm:$0xff]
    %v562 = vld [vmem:[#allocation7 + $0x5e0] sm:$0xff]
    %v563 = vld [vmem:[#allocation7 + $0x5e8] sm:$0xff]
    %v564 = vld [vmem:[#allocation7 + $0x5f0] sm:$0xff]
    %v565 = vld [vmem:[#allocation7 + $0x5f8] sm:$0xff]
    %v566 = vld [vmem:[#allocation7 + $0x600] sm:$0xff]
    %v567 = vld [vmem:[#allocation7 + $0x608] sm:$0xff]
    %v568 = vld [vmem:[#allocation7 + $0x610] sm:$0xff]
    %v569 = vld [vmem:[#allocation7 + $0x618] sm:$0xff]
    %v570 = vld [vmem:[#allocation7 + $0x620] sm:$0xff]
    %v571 = vld [vmem:[#allocation7 + $0x628] sm:$0xff]
    %v572 = vld [vmem:[#allocation7 + $0x630] sm:$0xff]
    %v573 = vld [vmem:[#allocation7 + $0x638] sm:$0xff]
    %v574 = vld [vmem:[#allocation7 + $0x640] sm:$0xff]
    %v575 = vld [vmem:[#allocation7 + $0x648] sm:$0xff]
    %v576 = vld [vmem:[#allocation7 + $0x650] sm:$0xff]
    %v577 = vld [vmem:[#allocation7 + $0x658] sm:$0xff]
    %v578 = vld [vmem:[#allocation7 + $0x660] sm:$0xff]
    %v579 = vld [vmem:[#allocation7 + $0x668] sm:$0xff]
    %v580 = vld [vmem:[#allocation7 + $0x670] sm:$0xff]
    %v581 = vld [vmem:[#allocation7 + $0x678] sm:$0xff]
    %v582 = vld [vmem:[#allocation7 + $0x680] sm:$0xff]
    %v583 = vld [vmem:[#allocation7 + $0x688] sm:$0xff]
    %v584 = vld [vmem:[#allocation7 + $0x690] sm:$0xff]
    %v585 = vld [vmem:[#allocation7 + $0x698] sm:$0xff]
    %v586 = vld [vmem:[#allocation7 + $0x6a0] sm:$0xff]
    %v587 = vld [vmem:[#allocation7 + $0x6a8] sm:$0xff]
    %v588 = vld [vmem:[#allocation7 + $0x6b0] sm:$0xff]
    %v589 = vld [vmem:[#allocation7 + $0x6b8] sm:$0xff]
    %v590 = vld [vmem:[#allocation7 + $0x6c0] sm:$0xff]
    %v591 = vld [vmem:[#allocation7 + $0x6c8] sm:$0xff]
    %v592 = vld [vmem:[#allocation7 + $0x6d0] sm:$0xff]
    %v593 = vld [vmem:[#allocation7 + $0x6d8] sm:$0xff]
    %v594 = vld [vmem:[#allocation7 + $0x6e0] sm:$0xff]
    %v595 = vld [vmem:[#allocation7 + $0x6e8] sm:$0xff]
    %v596 = vld [vmem:[#allocation7 + $0x6f0] sm:$0xff]
    %v597 = vld [vmem:[#allocation7 + $0x6f8] sm:$0xff]
    %v598 = vld [vmem:[#allocation7 + $0x700] sm:$0xff]
    %v599 = vld [vmem:[#allocation7 + $0x708] sm:$0xff]
    %v600 = vld [vmem:[#allocation7 + $0x710] sm:$0xff]
    %v601 = vld [vmem:[#allocation7 + $0x718] sm:$0xff]
    %v602 = vld [vmem:[#allocation7 + $0x720] sm:$0xff]
    %v603 = vld [vmem:[#allocation7 + $0x728] sm:$0xff]
    %v604 = vld [vmem:[#allocation7 + $0x730] sm:$0xff]
    %v605 = vld [vmem:[#allocation7 + $0x738] sm:$0xff]
    %v606 = vld [vmem:[#allocation7 + $0x740] sm:$0xff]
    %v607 = vld [vmem:[#allocation7 + $0x748] sm:$0xff]
    %v608 = vld [vmem:[#allocation7 + $0x750] sm:$0xff]
    %v609 = vld [vmem:[#allocation7 + $0x758] sm:$0xff]
    %v610 = vld [vmem:[#allocation7 + $0x760] sm:$0xff]
    %v611 = vld [vmem:[#allocation7 + $0x768] sm:$0xff]
    %v612 = vld [vmem:[#allocation7 + $0x770] sm:$0xff]
    %v613 = vld [vmem:[#allocation7 + $0x778] sm:$0xff]
    %v614 = vld [vmem:[#allocation7 + $0x780] sm:$0xff]
    %v615 = vld [vmem:[#allocation7 + $0x788] sm:$0xff]
    %v616 = vld [vmem:[#allocation7 + $0x790] sm:$0xff]
    %v617 = vld [vmem:[#allocation7 + $0x798] sm:$0xff]
    %v618 = vld [vmem:[#allocation7 + $0x7a0] sm:$0xff]
    %v619 = vld [vmem:[#allocation7 + $0x7a8] sm:$0xff]
    %v620 = vld [vmem:[#allocation7 + $0x7b0] sm:$0xff]
    %v621 = vld [vmem:[#allocation7 + $0x7b8] sm:$0xff]
    %v622 = vld [vmem:[#allocation7 + $0x7c0] sm:$0xff]
    %v623 = vld [vmem:[#allocation7 + $0x7c8] sm:$0xff]
    %v624 = vld [vmem:[#allocation7 + $0x7d0] sm:$0xff]
    %v625 = vld [vmem:[#allocation7 + $0x7d8] sm:$0xff]
    %v626 = vld [vmem:[#allocation7 + $0x7e0] sm:$0xff]
    %v627 = vld [vmem:[#allocation7 + $0x7e8] sm:$0xff]
    %v628 = vld [vmem:[#allocation7 + $0x7f0] sm:$0xff]
    %v629 = vld [vmem:[#allocation7 + $0x7f8] sm:$0xff]
    %v630 = vld [vmem:[%s4] sm:$0xf]
    %v632 = vlaneseq
    %v633 = vshrl.u32 %v632, 7
    %v634 = vsub.s32 0, %v633
    %v635 = vrot.slane %v630, %v634
    %v636 = vlaneseq
    %v637 = vshrl.u32 %v636, 7
    %v638 = vsub.s32 1, %v637
    %v639 = vrot.slane %v630, %v638
    %v640 = vlaneseq
    %v641 = vshrl.u32 %v640, 7
    %v642 = vsub.s32 2, %v641
    %v643 = vrot.slane %v630, %v642
    %v644 = vlaneseq
    %v645 = vshrl.u32 %v644, 7
    %v646 = vsub.s32 3, %v645
    %v647 = vrot.slane %v630, %v646
    %652 = vmatprep.subr.mxu0 %v375
    %653 = vmatpush1.msra.mxu0 %v374
    %654 = vmatprep.subr.mxu0 %v379
    %655 = vmatpush1.msra.mxu0 %v378
    %656 = vmatprep.subr.mxu0 %v383
    %657 = vmatpush1.msra.mxu0 %v382
    %658 = vmatprep.subr.mxu0 %v387
    %659 = vmatpush1.msra.mxu0 %v386
    %660 = vmatprep.subr.mxu0 %v391
    %661 = vmatpush1.msra.mxu0 %v390
    %662 = vmatprep.subr.mxu0 %v395
    %663 = vmatpush1.msra.mxu0 %v394
    %664 = vmatprep.subr.mxu0 %v399
    %665 = vmatpush1.msra.mxu0 %v398
    %666 = vmatprep.subr.mxu0 %v403
    %667 = vmatpush1.msra.mxu0 %v402
    %668 = vmatprep.subr.mxu0 %v407
    %669 = vmatpush1.msra.mxu0 %v406
    %670 = vmatprep.subr.mxu0 %v411
    %671 = vmatpush1.msra.mxu0 %v410
    %672 = vmatprep.subr.mxu0 %v415
    %673 = vmatpush1.msra.mxu0 %v414
    %674 = vmatprep.subr.mxu0 %v419
    %675 = vmatpush1.msra.mxu0 %v418
    %676 = vmatprep.subr.mxu0 %v423
    %677 = vmatpush1.msra.mxu0 %v422
    %678 = vmatprep.subr.mxu0 %v427
    %679 = vmatpush1.msra.mxu0 %v426
    %680 = vmatprep.subr.mxu0 %v431
    %681 = vmatpush1.msra.mxu0 %v430
    %682 = vmatprep.subr.mxu0 %v435
    %683 = vmatpush1.msra.mxu0 %v434
    %684 = vmatprep.subr.mxu0 %v439
    %685 = vmatpush1.msra.mxu0 %v438
    %686 = vmatprep.subr.mxu0 %v443
    %687 = vmatpush1.msra.mxu0 %v442
    %688 = vmatprep.subr.mxu0 %v447
    %689 = vmatpush1.msra.mxu0 %v446
    %690 = vmatprep.subr.mxu0 %v451
    %691 = vmatpush1.msra.mxu0 %v450
    %692 = vmatprep.subr.mxu0 %v455
    %693 = vmatpush1.msra.mxu0 %v454
    %694 = vmatprep.subr.mxu0 %v459
    %695 = vmatpush1.msra.mxu0 %v458
    %696 = vmatprep.subr.mxu0 %v463
    %697 = vmatpush1.msra.mxu0 %v462
    %698 = vmatprep.subr.mxu0 %v467
    %699 = vmatpush1.msra.mxu0 %v466
    %700 = vmatprep.subr.mxu0 %v471
    %701 = vmatpush1.msra.mxu0 %v470
    %702 = vmatprep.subr.mxu0 %v475
    %703 = vmatpush1.msra.mxu0 %v474
    %704 = vmatprep.subr.mxu0 %v479
    %705 = vmatpush1.msra.mxu0 %v478
    %706 = vmatprep.subr.mxu0 %v483
    %707 = vmatpush1.msra.mxu0 %v482
    %708 = vmatprep.subr.mxu0 %v487
    %709 = vmatpush1.msra.mxu0 %v486
    %710 = vmatprep.subr.mxu0 %v491
    %711 = vmatpush1.msra.mxu0 %v490
    %712 = vmatprep.subr.mxu0 %v495
    %713 = vmatpush1.msra.mxu0 %v494
    %714 = vmatprep.subr.mxu0 %v499
    %715 = vmatpush1.msra.mxu0 %v498
    %716 = vmatprep.mubr.f32.mxu0 %v301
    %717 = vmatmul.mubr.f32.gmra.mrb[0].mxu0 %v299
    %v718 = vpop.f32.mrb[0].mxu0
    %v719 = vadd.f32 %v635, %v718
    %v720 = vpop.f32.mrb[0].mxu0
    %v721 = vadd.f32 %v639, %v720
    %722 = vdwg.mxu0
    %723 = vmatprep.subr.mxu0 %v503
    %724 = vmatpush1.msra.mxu0 %v502
    %725 = vmatprep.subr.mxu0 %v507
    %726 = vmatpush1.msra.mxu0 %v506
    %727 = vmatprep.subr.mxu0 %v511
    %728 = vmatpush1.msra.mxu0 %v510
    %729 = vmatprep.subr.mxu0 %v515
    %730 = vmatpush1.msra.mxu0 %v514
    %731 = vmatprep.subr.mxu0 %v519
    %732 = vmatpush1.msra.mxu0 %v518
    %733 = vmatprep.subr.mxu0 %v523
    %734 = vmatpush1.msra.mxu0 %v522
    %735 = vmatprep.subr.mxu0 %v527
    %736 = vmatpush1.msra.mxu0 %v526
    %737 = vmatprep.subr.mxu0 %v531
    %738 = vmatpush1.msra.mxu0 %v530
    %739 = vmatprep.subr.mxu0 %v535
    %740 = vmatpush1.msra.mxu0 %v534
    %741 = vmatprep.subr.mxu0 %v539
    %742 = vmatpush1.msra.mxu0 %v538
    %743 = vmatprep.subr.mxu0 %v543
    %744 = vmatpush1.msra.mxu0 %v542
    %745 = vmatprep.subr.mxu0 %v547
    %746 = vmatpush1.msra.mxu0 %v546
    %747 = vmatprep.subr.mxu0 %v551
    %748 = vmatpush1.msra.mxu0 %v550
    %749 = vmatprep.subr.mxu0 %v555
    %750 = vmatpush1.msra.mxu0 %v554
    %751 = vmatprep.subr.mxu0 %v559
    %752 = vmatpush1.msra.mxu0 %v558
    %753 = vmatprep.subr.mxu0 %v563
    %754 = vmatpush1.msra.mxu0 %v562
    %755 = vmatprep.subr.mxu0 %v567
    %756 = vmatpush1.msra.mxu0 %v566
    %757 = vmatprep.subr.mxu0 %v571
    %758 = vmatpush1.msra.mxu0 %v570
    %759 = vmatprep.subr.mxu0 %v575
    %760 = vmatpush1.msra.mxu0 %v574
    %761 = vmatprep.subr.mxu0 %v579
    %762 = vmatpush1.msra.mxu0 %v578
    %763 = vmatprep.subr.mxu0 %v583
    %764 = vmatpush1.msra.mxu0 %v582
    %765 = vmatprep.subr.mxu0 %v587
    %766 = vmatpush1.msra.mxu0 %v586
    %767 = vmatprep.subr.mxu0 %v591
    %768 = vmatpush1.msra.mxu0 %v590
    %769 = vmatprep.subr.mxu0 %v595
    %770 = vmatpush1.msra.mxu0 %v594
    %771 = vmatprep.subr.mxu0 %v599
    %772 = vmatpush1.msra.mxu0 %v598
    %773 = vmatprep.subr.mxu0 %v603
    %774 = vmatpush1.msra.mxu0 %v602
    %775 = vmatprep.subr.mxu0 %v607
    %776 = vmatpush1.msra.mxu0 %v606
    %777 = vmatprep.subr.mxu0 %v611
    %778 = vmatpush1.msra.mxu0 %v610
    %779 = vmatprep.subr.mxu0 %v615
    %780 = vmatpush1.msra.mxu0 %v614
    %781 = vmatprep.subr.mxu0 %v619
    %782 = vmatpush1.msra.mxu0 %v618
    %783 = vmatprep.subr.mxu0 %v623
    %784 = vmatpush1.msra.mxu0 %v622
    %785 = vmatprep.subr.mxu0 %v627
    %786 = vmatpush1.msra.mxu0 %v626
    %787 = vmatprep.mubr.f32.mxu0 %v372
    %788 = vmatmul.mubr.f32.gmra.mrb[0].mxu0 %v370
    %v789 = vpop.f32.mrb[0].mxu0
    %v790 = vadd.f32 %v719, %v789
    %v791 = vpop.f32.mrb[0].mxu0
    %v792 = vadd.f32 %v721, %v791
    %793 = vdwg.mxu0
    %794 = vmatprep.subr.mxu0 %v377
    %795 = vmatpush1.msra.mxu0 %v376
    %796 = vmatprep.subr.mxu0 %v381
    %797 = vmatpush1.msra.mxu0 %v380
    %798 = vmatprep.subr.mxu0 %v385
    %799 = vmatpush1.msra.mxu0 %v384
    %800 = vmatprep.subr.mxu0 %v389
    %801 = vmatpush1.msra.mxu0 %v388
    %802 = vmatprep.subr.mxu0 %v393
    %803 = vmatpush1.msra.mxu0 %v392
    %804 = vmatprep.subr.mxu0 %v397
    %805 = vmatpush1.msra.mxu0 %v396
    %806 = vmatprep.subr.mxu0 %v401
    %807 = vmatpush1.msra.mxu0 %v400
    %808 = vmatprep.subr.mxu0 %v405
    %809 = vmatpush1.msra.mxu0 %v404
    %810 = vmatprep.subr.mxu0 %v409
    %811 = vmatpush1.msra.mxu0 %v408
    %812 = vmatprep.subr.mxu0 %v413
    %813 = vmatpush1.msra.mxu0 %v412
    %814 = vmatprep.subr.mxu0 %v417
    %815 = vmatpush1.msra.mxu0 %v416
    %816 = vmatprep.subr.mxu0 %v421
    %817 = vmatpush1.msra.mxu0 %v420
    %818 = vmatprep.subr.mxu0 %v425
    %819 = vmatpush1.msra.mxu0 %v424
    %820 = vmatprep.subr.mxu0 %v429
    %821 = vmatpush1.msra.mxu0 %v428
    %822 = vmatprep.subr.mxu0 %v433
    %823 = vmatpush1.msra.mxu0 %v432
    %824 = vmatprep.subr.mxu0 %v437
    %825 = vmatpush1.msra.mxu0 %v436
    %826 = vmatprep.subr.mxu0 %v441
    %827 = vmatpush1.msra.mxu0 %v440
    %828 = vmatprep.subr.mxu0 %v445
    %829 = vmatpush1.msra.mxu0 %v444
    %830 = vmatprep.subr.mxu0 %v449
    %831 = vmatpush1.msra.mxu0 %v448
    %832 = vmatprep.subr.mxu0 %v453
    %833 = vmatpush1.msra.mxu0 %v452
    %834 = vmatprep.subr.mxu0 %v457
    %835 = vmatpush1.msra.mxu0 %v456
    %836 = vmatprep.subr.mxu0 %v461
    %837 = vmatpush1.msra.mxu0 %v460
    %838 = vmatprep.subr.mxu0 %v465
    %839 = vmatpush1.msra.mxu0 %v464
    %840 = vmatprep.subr.mxu0 %v469
    %841 = vmatpush1.msra.mxu0 %v468
    %842 = vmatprep.subr.mxu0 %v473
    %843 = vmatpush1.msra.mxu0 %v472
    %844 = vmatprep.subr.mxu0 %v477
    %845 = vmatpush1.msra.mxu0 %v476
    %846 = vmatprep.subr.mxu0 %v481
    %847 = vmatpush1.msra.mxu0 %v480
    %848 = vmatprep.subr.mxu0 %v485
    %849 = vmatpush1.msra.mxu0 %v484
    %850 = vmatprep.subr.mxu0 %v489
    %851 = vmatpush1.msra.mxu0 %v488
    %852 = vmatprep.subr.mxu0 %v493
    %853 = vmatpush1.msra.mxu0 %v492
    %854 = vmatprep.subr.mxu0 %v497
    %855 = vmatpush1.msra.mxu0 %v496
    %856 = vmatprep.subr.mxu0 %v501
    %857 = vmatpush1.msra.mxu0 %v500
    %858 = vmatprep.mubr.f32.mxu0 %v301
    %859 = vmatmul.mubr.f32.gmra.mrb[0].mxu0 %v299
    %v860 = vpop.f32.mrb[0].mxu0
    %v861 = vadd.f32 %v643, %v860
    %v862 = vpop.f32.mrb[0].mxu0
    %v863 = vadd.f32 %v647, %v862
    %864 = vdwg.mxu0
    %865 = vmatprep.subr.mxu0 %v505
    %866 = vmatpush1.msra.mxu0 %v504
    %867 = vmatprep.subr.mxu0 %v509
    %868 = vmatpush1.msra.mxu0 %v508
    %869 = vmatprep.subr.mxu0 %v513
    %870 = vmatpush1.msra.mxu0 %v512
    %871 = vmatprep.subr.mxu0 %v517
    %872 = vmatpush1.msra.mxu0 %v516
    %873 = vmatprep.subr.mxu0 %v521
    %874 = vmatpush1.msra.mxu0 %v520
    %875 = vmatprep.subr.mxu0 %v525
    %876 = vmatpush1.msra.mxu0 %v524
    %877 = vmatprep.subr.mxu0 %v529
    %878 = vmatpush1.msra.mxu0 %v528
    %879 = vmatprep.subr.mxu0 %v533
    %880 = vmatpush1.msra.mxu0 %v532
    %881 = vmatprep.subr.mxu0 %v537
    %882 = vmatpush1.msra.mxu0 %v536
    %883 = vmatprep.subr.mxu0 %v541
    %884 = vmatpush1.msra.mxu0 %v540
    %885 = vmatprep.subr.mxu0 %v545
    %886 = vmatpush1.msra.mxu0 %v544
    %887 = vmatprep.subr.mxu0 %v549
    %888 = vmatpush1.msra.mxu0 %v548
    %889 = vmatprep.subr.mxu0 %v553
    %890 = vmatpush1.msra.mxu0 %v552
    %891 = vmatprep.subr.mxu0 %v557
    %892 = vmatpush1.msra.mxu0 %v556
    %893 = vmatprep.subr.mxu0 %v561
    %894 = vmatpush1.msra.mxu0 %v560
    %895 = vmatprep.subr.mxu0 %v565
    %896 = vmatpush1.msra.mxu0 %v564
    %897 = vmatprep.subr.mxu0 %v569
    %898 = vmatpush1.msra.mxu0 %v568
    %899 = vmatprep.subr.mxu0 %v573
    %900 = vmatpush1.msra.mxu0 %v572
    %901 = vmatprep.subr.mxu0 %v577
    %902 = vmatpush1.msra.mxu0 %v576
    %903 = vmatprep.subr.mxu0 %v581
    %904 = vmatpush1.msra.mxu0 %v580
    %905 = vmatprep.subr.mxu0 %v585
    %906 = vmatpush1.msra.mxu0 %v584
    %907 = vmatprep.subr.mxu0 %v589
    %908 = vmatpush1.msra.mxu0 %v588
    %909 = vmatprep.subr.mxu0 %v593
    %910 = vmatpush1.msra.mxu0 %v592
    %911 = vmatprep.subr.mxu0 %v597
    %912 = vmatpush1.msra.mxu0 %v596
    %913 = vmatprep.subr.mxu0 %v601
    %914 = vmatpush1.msra.mxu0 %v600
    %915 = vmatprep.subr.mxu0 %v605
    %916 = vmatpush1.msra.mxu0 %v604
    %917 = vmatprep.subr.mxu0 %v609
    %918 = vmatpush1.msra.mxu0 %v608
    %919 = vmatprep.subr.mxu0 %v613
    %920 = vmatpush1.msra.mxu0 %v612
    %921 = vmatprep.subr.mxu0 %v617
    %922 = vmatpush1.msra.mxu0 %v616
    %923 = vmatprep.subr.mxu0 %v621
    %924 = vmatpush1.msra.mxu0 %v620
    %925 = vmatprep.subr.mxu0 %v625
    %926 = vmatpush1.msra.mxu0 %v624
    %927 = vmatprep.subr.mxu0 %v629
    %928 = vmatpush1.msra.mxu0 %v628
    %929 = vmatprep.mubr.f32.mxu0 %v372
    %930 = vmatmul.mubr.f32.gmra.mrb[0].mxu0 %v370
    %v931 = vpop.f32.mrb[0].mxu0
    %v932 = vadd.f32 %v861, %v931
    %v933 = vpop.f32.mrb[0].mxu0
    %v934 = vadd.f32 %v863, %v933
    %935 = vdwg.mxu0
    %v936 = vmax.f32 %v790, 0.0
    %v937 = vmax.f32 %v792, 0.0
    %v938 = vmax.f32 %v932, 0.0
    %v939 = vmax.f32 %v934, 0.0
    %v940 = vld [vmem:[#allocation8] sm:$0xff]
    %v941 = vld [vmem:[#allocation8 + $0x8] sm:$0xff]
    %v942 = vld [vmem:[#allocation8 + $0x10] sm:$0xff]
    %v943 = vld [vmem:[#allocation8 + $0x18] sm:$0xff]
    %v944 = vld [vmem:[#allocation8 + $0x20] sm:$0xff]
    %v945 = vld [vmem:[#allocation8 + $0x28] sm:$0xff]
    %v946 = vld [vmem:[#allocation8 + $0x30] sm:$0xff]
    %v947 = vld [vmem:[#allocation8 + $0x38] sm:$0xff]
    %v948 = vld [vmem:[#allocation8 + $0x40] sm:$0xff]
    %v949 = vld [vmem:[#allocation8 + $0x48] sm:$0xff]
    %v950 = vld [vmem:[#allocation8 + $0x50] sm:$0xff]
    %v951 = vld [vmem:[#allocation8 + $0x58] sm:$0xff]
    %v952 = vld [vmem:[#allocation8 + $0x60] sm:$0xff]
    %v953 = vld [vmem:[#allocation8 + $0x68] sm:$0xff]
    %v954 = vld [vmem:[#allocation8 + $0x70] sm:$0xff]
    %v955 = vld [vmem:[#allocation8 + $0x78] sm:$0xff]
    %v956 = vld [vmem:[#allocation8 + $0x80] sm:$0xff]
    %v957 = vld [vmem:[#allocation8 + $0x88] sm:$0xff]
    %v958 = vld [vmem:[#allocation8 + $0x90] sm:$0xff]
    %v959 = vld [vmem:[#allocation8 + $0x98] sm:$0xff]
    %v960 = vld [vmem:[#allocation8 + $0xa0] sm:$0xff]
    %v961 = vld [vmem:[#allocation8 + $0xa8] sm:$0xff]
    %v962 = vld [vmem:[#allocation8 + $0xb0] sm:$0xff]
    %v963 = vld [vmem:[#allocation8 + $0xb8] sm:$0xff]
    %v964 = vld [vmem:[#allocation8 + $0xc0] sm:$0xff]
    %v965 = vld [vmem:[#allocation8 + $0xc8] sm:$0xff]
    %v966 = vld [vmem:[#allocation8 + $0xd0] sm:$0xff]
    %v967 = vld [vmem:[#allocation8 + $0xd8] sm:$0xff]
    %v968 = vld [vmem:[#allocation8 + $0xe0] sm:$0xff]
    %v969 = vld [vmem:[#allocation8 + $0xe8] sm:$0xff]
    %v970 = vld [vmem:[#allocation8 + $0xf0] sm:$0xff]
    %v971 = vld [vmem:[#allocation8 + $0xf8] sm:$0xff]
    %v972 = vld [vmem:[#allocation8 + $0x100] sm:$0xff]
    %v973 = vld [vmem:[#allocation8 + $0x108] sm:$0xff]
    %v974 = vld [vmem:[#allocation8 + $0x110] sm:$0xff]
    %v975 = vld [vmem:[#allocation8 + $0x118] sm:$0xff]
    %v976 = vld [vmem:[#allocation8 + $0x120] sm:$0xff]
    %v977 = vld [vmem:[#allocation8 + $0x128] sm:$0xff]
    %v978 = vld [vmem:[#allocation8 + $0x130] sm:$0xff]
    %v979 = vld [vmem:[#allocation8 + $0x138] sm:$0xff]
    %v980 = vld [vmem:[#allocation8 + $0x140] sm:$0xff]
    %v981 = vld [vmem:[#allocation8 + $0x148] sm:$0xff]
    %v982 = vld [vmem:[#allocation8 + $0x150] sm:$0xff]
    %v983 = vld [vmem:[#allocation8 + $0x158] sm:$0xff]
    %v984 = vld [vmem:[#allocation8 + $0x160] sm:$0xff]
    %v985 = vld [vmem:[#allocation8 + $0x168] sm:$0xff]
    %v986 = vld [vmem:[#allocation8 + $0x170] sm:$0xff]
    %v987 = vld [vmem:[#allocation8 + $0x178] sm:$0xff]
    %v988 = vld [vmem:[#allocation8 + $0x180] sm:$0xff]
    %v989 = vld [vmem:[#allocation8 + $0x188] sm:$0xff]
    %v990 = vld [vmem:[#allocation8 + $0x190] sm:$0xff]
    %v991 = vld [vmem:[#allocation8 + $0x198] sm:$0xff]
    %v992 = vld [vmem:[#allocation8 + $0x1a0] sm:$0xff]
    %v993 = vld [vmem:[#allocation8 + $0x1a8] sm:$0xff]
    %v994 = vld [vmem:[#allocation8 + $0x1b0] sm:$0xff]
    %v995 = vld [vmem:[#allocation8 + $0x1b8] sm:$0xff]
    %v996 = vld [vmem:[#allocation8 + $0x1c0] sm:$0xff]
    %v997 = vld [vmem:[#allocation8 + $0x1c8] sm:$0xff]
    %v998 = vld [vmem:[#allocation8 + $0x1d0] sm:$0xff]
    %v999 = vld [vmem:[#allocation8 + $0x1d8] sm:$0xff]
    %v1000 = vld [vmem:[#allocation8 + $0x1e0] sm:$0xff]
    %v1001 = vld [vmem:[#allocation8 + $0x1e8] sm:$0xff]
    %v1002 = vld [vmem:[#allocation8 + $0x1f0] sm:$0xff]
    %v1003 = vld [vmem:[#allocation8 + $0x1f8] sm:$0xff]
    %v1004 = vld [vmem:[%s6] sm:$0x1]
    %v1006 = vlaneseq
    %v1007 = vshrl.u32 %v1006, 7
    %v1008 = vsub.s32 0, %v1007
    %v1009 = vrot.slane %v1004, %v1008
    %1011 = vmatprep.subr.mxu0 0.0
    %1012 = vmatpush1.msra.mxu0 %v940
    %1013 = vmatprep.subr.mxu0 0.0
    %1014 = vmatpush1.msra.mxu0 %v941
    %1015 = vmatprep.subr.mxu0 0.0
    %1016 = vmatpush1.msra.mxu0 %v942
    %1017 = vmatprep.subr.mxu0 0.0
    %1018 = vmatpush1.msra.mxu0 %v943
    %1019 = vmatprep.subr.mxu0 0.0
    %1020 = vmatpush1.msra.mxu0 %v944
    %1021 = vmatprep.subr.mxu0 0.0
    %1022 = vmatpush1.msra.mxu0 %v945
    %1023 = vmatprep.subr.mxu0 0.0
    %1024 = vmatpush1.msra.mxu0 %v946
    %1025 = vmatprep.subr.mxu0 0.0
    %1026 = vmatpush1.msra.mxu0 %v947
    %1027 = vmatprep.subr.mxu0 0.0
    %1028 = vmatpush1.msra.mxu0 %v948
    %1029 = vmatprep.subr.mxu0 0.0
    %1030 = vmatpush1.msra.mxu0 %v949
    %1031 = vmatprep.subr.mxu0 0.0
    %1032 = vmatpush1.msra.mxu0 %v950
    %1033 = vmatprep.subr.mxu0 0.0
    %1034 = vmatpush1.msra.mxu0 %v951
    %1035 = vmatprep.subr.mxu0 0.0
    %1036 = vmatpush1.msra.mxu0 %v952
    %1037 = vmatprep.subr.mxu0 0.0
    %1038 = vmatpush1.msra.mxu0 %v953
    %1039 = vmatprep.subr.mxu0 0.0
    %1040 = vmatpush1.msra.mxu0 %v954
    %1041 = vmatprep.subr.mxu0 0.0
    %1042 = vmatpush1.msra.mxu0 %v955
    %1043 = vmatprep.subr.mxu0 0.0
    %1044 = vmatpush1.msra.mxu0 %v956
    %1045 = vmatprep.subr.mxu0 0.0
    %1046 = vmatpush1.msra.mxu0 %v957
    %1047 = vmatprep.subr.mxu0 0.0
    %1048 = vmatpush1.msra.mxu0 %v958
    %1049 = vmatprep.subr.mxu0 0.0
    %1050 = vmatpush1.msra.mxu0 %v959
    %1051 = vmatprep.subr.mxu0 0.0
    %1052 = vmatpush1.msra.mxu0 %v960
    %1053 = vmatprep.subr.mxu0 0.0
    %1054 = vmatpush1.msra.mxu0 %v961
    %1055 = vmatprep.subr.mxu0 0.0
    %1056 = vmatpush1.msra.mxu0 %v962
    %1057 = vmatprep.subr.mxu0 0.0
    %1058 = vmatpush1.msra.mxu0 %v963
    %1059 = vmatprep.subr.mxu0 0.0
    %1060 = vmatpush1.msra.mxu0 %v964
    %1061 = vmatprep.subr.mxu0 0.0
    %1062 = vmatpush1.msra.mxu0 %v965
    %1063 = vmatprep.subr.mxu0 0.0
    %1064 = vmatpush1.msra.mxu0 %v966
    %1065 = vmatprep.subr.mxu0 0.0
    %1066 = vmatpush1.msra.mxu0 %v967
    %1067 = vmatprep.subr.mxu0 0.0
    %1068 = vmatpush1.msra.mxu0 %v968
    %1069 = vmatprep.subr.mxu0 0.0
    %1070 = vmatpush1.msra.mxu0 %v969
    %1071 = vmatprep.subr.mxu0 0.0
    %1072 = vmatpush1.msra.mxu0 %v970
    %1073 = vmatprep.subr.mxu0 0.0
    %1074 = vmatpush1.msra.mxu0 %v971
    %1075 = vmatprep.mubr.f32.mxu0 %v937
    %1076 = vmatmul.mubr.f32.gmra.mrb[0].mxu0 %v936
    %v1077 = vpop.f32.mrb[0].mxu0
    %v1078 = vadd.f32 %v1009, %v1077
    %v1079 = vpop.f32.mrb[0].mxu0
    %1080 = vdwg.mxu0
    %1081 = vmatprep.subr.mxu0 0.0
    %1082 = vmatpush1.msra.mxu0 %v972
    %1083 = vmatprep.subr.mxu0 0.0
    %1084 = vmatpush1.msra.mxu0 %v973
    %1085 = vmatprep.subr.mxu0 0.0
    %1086 = vmatpush1.msra.mxu0 %v974
    %1087 = vmatprep.subr.mxu0 0.0
    %1088 = vmatpush1.msra.mxu0 %v975
    %1089 = vmatprep.subr.mxu0 0.0
    %1090 = vmatpush1.msra.mxu0 %v976
    %1091 = vmatprep.subr.mxu0 0.0
    %1092 = vmatpush1.msra.mxu0 %v977
    %1093 = vmatprep.subr.mxu0 0.0
    %1094 = vmatpush1.msra.mxu0 %v978
    %1095 = vmatprep.subr.mxu0 0.0
    %1096 = vmatpush1.msra.mxu0 %v979
    %1097 = vmatprep.subr.mxu0 0.0
    %1098 = vmatpush1.msra.mxu0 %v980
    %1099 = vmatprep.subr.mxu0 0.0
    %1100 = vmatpush1.msra.mxu0 %v981
    %1101 = vmatprep.subr.mxu0 0.0
    %1102 = vmatpush1.msra.mxu0 %v982
    %1103 = vmatprep.subr.mxu0 0.0
    %1104 = vmatpush1.msra.mxu0 %v983
    %1105 = vmatprep.subr.mxu0 0.0
    %1106 = vmatpush1.msra.mxu0 %v984
    %1107 = vmatprep.subr.mxu0 0.0
    %1108 = vmatpush1.msra.mxu0 %v985
    %1109 = vmatprep.subr.mxu0 0.0
    %1110 = vmatpush1.msra.mxu0 %v986
    %1111 = vmatprep.subr.mxu0 0.0
    %1112 = vmatpush1.msra.mxu0 %v987
    %1113 = vmatprep.subr.mxu0 0.0
    %1114 = vmatpush1.msra.mxu0 %v988
    %1115 = vmatprep.subr.mxu0 0.0
    %1116 = vmatpush1.msra.mxu0 %v989
    %1117 = vmatprep.subr.mxu0 0.0
    %1118 = vmatpush1.msra.mxu0 %v990
    %1119 = vmatprep.subr.mxu0 0.0
    %1120 = vmatpush1.msra.mxu0 %v991
    %1121 = vmatprep.subr.mxu0 0.0
    %1122 = vmatpush1.msra.mxu0 %v992
    %1123 = vmatprep.subr.mxu0 0.0
    %1124 = vmatpush1.msra.mxu0 %v993
    %1125 = vmatprep.subr.mxu0 0.0
    %1126 = vmatpush1.msra.mxu0 %v994
    %1127 = vmatprep.subr.mxu0 0.0
    %1128 = vmatpush1.msra.mxu0 %v995
    %1129 = vmatprep.subr.mxu0 0.0
    %1130 = vmatpush1.msra.mxu0 %v996
    %1131 = vmatprep.subr.mxu0 0.0
    %1132 = vmatpush1.msra.mxu0 %v997
    %1133 = vmatprep.subr.mxu0 0.0
    %1134 = vmatpush1.msra.mxu0 %v998
    %1135 = vmatprep.subr.mxu0 0.0
    %1136 = vmatpush1.msra.mxu0 %v999
    %1137 = vmatprep.subr.mxu0 0.0
    %1138 = vmatpush1.msra.mxu0 %v1000
    %1139 = vmatprep.subr.mxu0 0.0
    %1140 = vmatpush1.msra.mxu0 %v1001
    %1141 = vmatprep.subr.mxu0 0.0
    %1142 = vmatpush1.msra.mxu0 %v1002
    %1143 = vmatprep.subr.mxu0 0.0
    %1144 = vmatpush1.msra.mxu0 %v1003
    %1145 = vmatprep.mubr.f32.mxu0 %v939
    %1146 = vmatmul.mubr.f32.gmra.mrb[0].mxu0 %v938
    %v1147 = vpop.f32.mrb[0].mxu0
    %v1148 = vadd.f32 %v1078, %v1147
    %v1149 = vpop.f32.mrb[0].mxu0
    %1150 = vdwg.mxu0
    %1151 = vst [vmem:[#allocation10] sm:$0xff] %v1148
    // Predicated region
    $region46: #{tpu_custom_call.1} parent=1 // pred_check
      _
    $region47: #{tpu_custom_call.1} parent=1 // pred_check_branch
      %1153 = sbr.rel (0) target = $region49
    $region48: #{tpu_custom_call.1} parent=1 // pred_region
      %s1155 = ssub.s32 128, 128
      %1156 = vsyncadd [#allocation4], %s1155
      %s1158 = sshll.u32 [#allocation10], 4
      %s1159 = int_to_ptr.vmem [resolvable:$true] %s1158
      %1161 = dma.vmem_to_hbm [thread:$0]  %s1159, 128, %s7, [#allocation4]
    $region49: #{tpu_custom_call.1} parent=1 // pred_fallthru
      _
    // Predicated region
    $region50: #{tpu_custom_call.1} parent=1 // pred_check
      _
    $region51: #{tpu_custom_call.1} parent=1 // pred_check_branch
      %1163 = sbr.rel (0) target = $region53
    $region52: #{tpu_custom_call.1} parent=1 // pred_region
      %1164 = dma.done [#allocation4], 128
    $region53: #{tpu_custom_call.1} parent=1 // pred_fallthru
      _
    %1165 = vsyncpa [#allocation3], 1
    %1166 = vsyncpa [#allocation6], 1
    %1167 = vsyncpa [#allocation9], 1
    %1168 = vsyncpa [#allocation4], 1

</llo_original>
